<compile_context>
chip_gen: v7x
topology: tpu7x:2x2x1
jax: 0.10.0
libtpu: 0.0.40
codegen_flags: <defaults>
</compile_context>

<pallas_src>
import jax
import jax.numpy as jnp
from jax import lax
from jax.experimental import pallas as pl
from jax.experimental.pallas import tpu as pltpu

EPS = 1e-5


def _bn_kernel_2d(x_ref, gamma_ref, beta_ref, o_ref):
    # x_ref / o_ref: (TC, HW) channel-tile view (N == 1 squeezed by wrapper).
    # gamma_ref / beta_ref: (C, 1), resident across the whole grid
    # (constant block index -> fetched once, sliced per tile below).
    tc, hw = x_ref.shape
    off = pl.multiple_of(pl.program_id(0) * tc, tc)
    x = x_ref[...]
    inv_cnt = 1.0 / hw

    # Single-pass per-channel statistics (reduce over the lane/spatial axis).
    s = jnp.sum(x, axis=1, keepdims=True)        # (TC, 1)
    ss = jnp.sum(x * x, axis=1, keepdims=True)   # (TC, 1)
    mean = s * inv_cnt
    # Biased variance; clamp guards tiny negative values from f32 cancellation.
    var = jnp.maximum(ss * inv_cnt - mean * mean, 0.0)
    inv_std = lax.rsqrt(var + EPS)

    # Fold affine into one scale + one bias column (cheap (TC,1) math).
    scale = gamma_ref[pl.ds(off, tc), :] * inv_std   # (TC, 1)
    bias = beta_ref[pl.ds(off, tc), :] - mean * scale

    # One mul + one add per element (sublane-broadcast of scale/bias).
    o_ref[...] = x * scale + bias


def _bn_kernel_3d(x_ref, gamma_ref, beta_ref, o_ref):
    # General N > 1 fallback: x_ref (N, TC, HW), gamma/beta (1, TC, 1).
    x = x_ref[...]
    n, _, hw = x.shape
    inv_cnt = 1.0 / (n * hw)
    s = jnp.sum(x, axis=(0, 2), keepdims=True)
    ss = jnp.sum(x * x, axis=(0, 2), keepdims=True)
    mean = s * inv_cnt
    var = jnp.maximum(ss * inv_cnt - mean * mean, 0.0)
    inv_std = lax.rsqrt(var + EPS)
    scale = gamma_ref[...] * inv_std
    bias = beta_ref[...] - mean * scale
    o_ref[...] = x * scale + bias


def _tensorcores_per_chip():
    """Best-effort chip detection: v7x has 2 TensorCores per chip."""
    try:
        kind = jax.devices()[0].device_kind.lower()
    except Exception:
        return 1
    return 2 if "v7" in kind else 1


def _pick_channel_tile(c, max_tile):
    """Largest channel tile <= max_tile that divides C and is a multiple of 8."""
    if c <= max_tile:
        return c
    for t in range(max_tile, 7, -8):
        if c % t == 0:
            return t
    return c


def batchnorm2d(x_nchw, gamma, beta):
    """x_nchw: f32[N, C, H, W]; gamma, beta: f32[C]. Returns f32[N, C, H, W]."""
    n, c, h, w = x_nchw.shape
    hw = h * w

    # Fewer grid steps on single-TC chips (v5e/v6e); >=2 tiles per core on v7x.
    max_tile = 128 if _tensorcores_per_chip() >= 2 else 256
    tc = _pick_channel_tile(c, max_tile)
    grid = (c // tc,)

    if n == 1:
        # Free reshape (no data movement): [1, C, H, W] -> [C, H*W].
        x2d = x_nchw.reshape(c, hw)
        gamma2d = gamma.reshape(c, 1)
        beta2d = beta.reshape(c, 1)

        out2d = pl.pallas_call(
            _bn_kernel_2d,
            out_shape=jax.ShapeDtypeStruct((c, hw), x2d.dtype),
            grid=grid,
            in_specs=[
                pl.BlockSpec((tc, hw), lambda i: (i, 0)),
                # Full-C gamma/beta with a constant block index: loaded once,
                # stays VMEM-resident across every grid step.
                pl.BlockSpec((c, 1), lambda i: (0, 0)),
                pl.BlockSpec((c, 1), lambda i: (0, 0)),
            ],
            out_specs=pl.BlockSpec((tc, hw), lambda i: (i, 0)),
            compiler_params=pltpu.CompilerParams(
                dimension_semantics=("parallel",),
            ),
        )(x2d, gamma2d, beta2d)
        return out2d.reshape(n, c, h, w)

    # General-batch fallback (channels still tiled on the grid).
    x3d = x_nchw.reshape(n, c, hw)
    gamma3d = gamma.reshape(1, c, 1)
    beta3d = beta.reshape(1, c, 1)
    out3d = pl.pallas_call(
        _bn_kernel_3d,
        out_shape=jax.ShapeDtypeStruct((n, c, hw), x3d.dtype),
        grid=grid,
        in_specs=[
            pl.BlockSpec((n, tc, hw), lambda i: (0, i, 0)),
            pl.BlockSpec((1, tc, 1), lambda i: (0, i, 0)),
            pl.BlockSpec((1, tc, 1), lambda i: (0, i, 0)),
        ],
        out_specs=pl.BlockSpec((n, tc, hw), lambda i: (0, i, 0)),
        compiler_params=pltpu.CompilerParams(
            dimension_semantics=("parallel",),
        ),
    )(x3d, gamma3d, beta3d)
    return out3d.reshape(n, c, h, w)


if __name__ == "__main__":
    # Module spec: BatchNorm2d(512); input shape from the reference script.
    N, C, H, W = 1, 512, 28, 28
    key = jax.random.PRNGKey(0)
    x = jax.random.normal(key, (N, C, H, W), dtype=jnp.float32)

    # PyTorch default affine init: weight=1, bias=0.
    gamma = jnp.ones((C,), dtype=jnp.float32)
    beta = jnp.zeros((C,), dtype=jnp.float32)

    y = batchnorm2d(x, gamma, beta)
    jax.block_until_ready(y)

    # Sanity check against a pure-JAX reference (training-mode BN, biased var).
    mean = jnp.mean(x, axis=(0, 2, 3), keepdims=True)
    var = jnp.mean((x - mean) ** 2, axis=(0, 2, 3), keepdims=True)
    ref = (x - mean) / jnp.sqrt(var + EPS) * gamma.reshape(1, C, 1, 1) + beta.reshape(1, C, 1, 1)
    err = jnp.max(jnp.abs(y - ref))
    assert err < 1e-4, f"mismatch vs reference: {err}"

    print("KERNEL_OK")
</pallas_src>

<mosaic_0001>
module attributes {stable_mosaic.version = 11 : i64} {
  func.func @_bn_kernel_2d(%arg0: i32, %arg1: memref<256x784xf32, #tpu.memory_space<vmem>>, %arg2: memref<512x1xf32, #tpu.memory_space<vmem>>, %arg3: memref<512x1xf32, #tpu.memory_space<vmem>>, %arg4: memref<256x784xf32, #tpu.memory_space<vmem>>) attributes {dimension_semantics = [#tpu.dimension_semantics<parallel>], iteration_bounds = array<i64: 2>, scalar_prefetch = 0 : i64, scratch_operands = 0 : i64, tpu.core_type = #tpu.core_type<tc>, window_params = [{transform_indices = @transform_0, window_bounds = array<i64: 256, 784>}, {pipeline_mode = #tpu.pipeline_mode<synchronous>, transform_indices = @transform_1, window_bounds = array<i64: 512, 1>}, {pipeline_mode = #tpu.pipeline_mode<synchronous>, transform_indices = @transform_2, window_bounds = array<i64: 512, 1>}, {transform_indices = @transform_3, window_bounds = array<i64: 256, 784>}]} {
    %c256_i32 = arith.constant 256 : i32
    %0 = arith.muli %arg0, %c256_i32 : i32
    %1 = tpu.assume_multiple %0, 256 : i32
    %c0 = arith.constant 0 : index
    %c0_0 = arith.constant 0 : index
    %2 = vector.load %arg1[%c0, %c0_0] : memref<256x784xf32, #tpu.memory_space<vmem>>, vector<256x784xf32>
    %cst = arith.constant dense<0.000000e+00> : vector<256xf32>
    %3 = vector.multi_reduction <add>, %2, %cst [1] : vector<256x784xf32> to vector<256xf32>
    %4 = vector.shape_cast %3 : vector<256xf32> to vector<256x1xf32>
    %5 = arith.mulf %2, %2 : vector<256x784xf32>
    %cst_1 = arith.constant dense<0.000000e+00> : vector<256xf32>
    %6 = vector.multi_reduction <add>, %5, %cst_1 [1] : vector<256x784xf32> to vector<256xf32>
    %7 = vector.shape_cast %6 : vector<256xf32> to vector<256x1xf32>
    %cst_2 = arith.constant 0.00127551018 : f32
    %8 = vector.broadcast %cst_2 : f32 to vector<256x1xf32>
    %9 = arith.mulf %4, %8 : vector<256x1xf32>
    %cst_3 = arith.constant 0.00127551018 : f32
    %10 = vector.broadcast %cst_3 : f32 to vector<256x1xf32>
    %11 = arith.mulf %7, %10 : vector<256x1xf32>
    %12 = arith.mulf %9, %9 : vector<256x1xf32>
    %13 = arith.subf %11, %12 : vector<256x1xf32>
    %cst_4 = arith.constant 0.000000e+00 : f32
    %14 = vector.broadcast %cst_4 : f32 to vector<256x1xf32>
    %15 = arith.maximumf %13, %14 : vector<256x1xf32>
    %cst_5 = arith.constant 9.99999974E-6 : f32
    %16 = vector.broadcast %cst_5 : f32 to vector<256x1xf32>
    %17 = arith.addf %15, %16 : vector<256x1xf32>
    %18 = math.rsqrt %17 : vector<256x1xf32>
    %19 = arith.index_cast %1 : i32 to index
    %c0_6 = arith.constant 0 : index
    %20 = vector.load %arg2[%19, %c0_6] : memref<512x1xf32, #tpu.memory_space<vmem>>, vector<256x1xf32>
    %21 = arith.mulf %20, %18 : vector<256x1xf32>
    %22 = arith.index_cast %1 : i32 to index
    %c0_7 = arith.constant 0 : index
    %23 = vector.load %arg3[%22, %c0_7] : memref<512x1xf32, #tpu.memory_space<vmem>>, vector<256x1xf32>
    %24 = arith.mulf %9, %21 : vector<256x1xf32>
    %25 = arith.subf %23, %24 : vector<256x1xf32>
    %26 = vector.broadcast %21 : vector<256x1xf32> to vector<256x784xf32>
    %27 = arith.mulf %2, %26 : vector<256x784xf32>
    %28 = vector.broadcast %25 : vector<256x1xf32> to vector<256x784xf32>
    %29 = arith.addf %27, %28 : vector<256x784xf32>
    %c0_8 = arith.constant 0 : index
    %c0_9 = arith.constant 0 : index
    %30 = vector.load %arg4[%c0_8, %c0_9] : memref<256x784xf32, #tpu.memory_space<vmem>>, vector<256x784xf32>
    tpu.vector_store %arg4[%c0_8, %c0_9], %29 {strides = array<i32>} : memref<256x784xf32, #tpu.memory_space<vmem>>, vector<256x784xf32>,
    return
  }
  func.func @transform_0(%arg0: i32) -> (i32, i32) {
    %c0_i32 = arith.constant 0 : i32
    %c0_i32_0 = arith.constant 0 : i32
    return %arg0, %c0_i32 : i32, i32
  }
  func.func @transform_1(%arg0: i32) -> (i32, i32) {
    %c0_i32 = arith.constant 0 : i32
    %c0_i32_0 = arith.constant 0 : i32
    %c0_i32_1 = arith.constant 0 : i32
    return %c0_i32, %c0_i32_0 : i32, i32
  }
  func.func @transform_2(%arg0: i32) -> (i32, i32) {
    %c0_i32 = arith.constant 0 : i32
    %c0_i32_0 = arith.constant 0 : i32
    %c0_i32_1 = arith.constant 0 : i32
    return %c0_i32, %c0_i32_0 : i32, i32
  }
  func.func @transform_3(%arg0: i32) -> (i32, i32) {
    %c0_i32 = arith.constant 0 : i32
    %c0_i32_0 = arith.constant 0 : i32
    return %arg0, %c0_i32 : i32, i32
  }
}

</mosaic_0001>

<llo_original>
// kernel: tpu_custom_call.1
$region0: #{tpu_custom_call.1}
  #allocation0 [shape = 'u32[]', space=smem, size = 0x4, offset = 0x4, fixed_abs, tag = 'smem constant byte address 0x4 - core index']
  #allocation1 [shape = 'u32[144,128]{1,0:T(1,128)}', space=vmem, size = 0x12000, scoped, tag = 'internal scratch']
  %s0 = inlined_call_operand.vmem [shape: f32[512,784], index: 0, kind: input, shape index: {}]
  %s1 = inlined_call_operand.vmem [shape: f32[512,1], index: 1, kind: input, shape index: {}]
  %s2 = inlined_call_operand.vmem [shape: f32[512,1], index: 2, kind: input, shape index: {}]
  %s3 = inlined_call_operand.vmem [shape: f32[512,784], index: 3, kind: output, shape index: {}]
  %s4 = sld [smem:[#allocation0]]
  $region45: #{tpu_custom_call.1} parent=0
    _
  %s6 = ssub.s32 1, %s4
  %s7 = scalar_select 0, %s6, %s4
  loop: start=0, step=1, limit=4
  $region2: #{tpu_custom_call.1} parent=0 // loop_pre_header
    _
  $region3: #{tpu_custom_call.1} parent=0 // loop_header
    %s9 = sphi 0, %s13
    %p10 = scmp.ge.s32.totalorder %s9, 4
    %s19 = sphi 0, %s21
    %s22 = sphi 0, %s19
    %s23 = sphi 0, %s22
    %s39 = sphi 0, %s23
    %s43 = sphi 0, %s43
    %s45 = sphi 0, %s43
    %s46 = sphi 0, %s45
    %s60 = sphi 0, %s46
    %s64 = sphi 0, %s64
    %s66 = sphi 0, %s64
    %s67 = sphi 0, %s66
    %s81 = sphi 0, %s67
    %s87 = sphi 0, %s89
    %s90 = sphi 0, %s87
    %s91 = sphi 0, %s90
    %s107 = sphi 0, %s91
  $region4: #{tpu_custom_call.1} parent=0 // loop_header_branch
    %12 = sbr.rel (%p10) target = $region8
  $region5: #{tpu_custom_call.1} parent=0 // loop_body
    %s14 = ssub.s32 %s9, 1
    %s15 = ssub.s32 %s9, 2
    %s16 = sadd.s32 %s9, 1
    %s17 = ssub.s32 %s9, %s16
    %p18 = scmp.eq.s32.totalorder %s17, 0
    %s20 = sadd.s32 %s19, 1
    %s21 = scalar_select %p18, %s19, %s20
    %p24 = pneg %p18
    %p25 = scmp.eq.s32.totalorder %s9, 1
    %p26 = por %p24, %p25
    %p27 = scmp.ne.s32.totalorder %s19, %s22
    %p28 = scmp.eq.s32.totalorder %s9, 0
    %p29 = por %p27, %p28
    %p30 = scmp.ne.s32.totalorder %s19, %s22
    %p31 = scmp.eq.s32.totalorder %s14, 1
    %p32 = por %p30, %p31
    %p33 = scmp.ne.s32.totalorder %s22, %s23
    %p34 = scmp.eq.s32.totalorder %s14, 0
    %p35 = por %p33, %p34
    %p36 = scmp.ne.s32.totalorder %s22, %s23
    %p37 = scmp.eq.s32.totalorder %s15, 1
    %p38 = por %p36, %p37
    %p40 = scmp.ne.s32.totalorder %s23, %s39
    %p41 = scmp.eq.s32.totalorder %s15, 0
    %p42 = por %p40, %p41
    %s44 = sadd.s32 %s43, 1
    %p47 = scmp.eq.s32.totalorder %s9, 1
    %p48 = scmp.ne.s32.totalorder %s43, %s45
    %p49 = scmp.eq.s32.totalorder %s9, 0
    %p50 = por %p48, %p49
    %p51 = scmp.ne.s32.totalorder %s43, %s45
    %p52 = scmp.eq.s32.totalorder %s14, 1
    %p53 = por %p51, %p52
    %p54 = scmp.ne.s32.totalorder %s45, %s46
    %p55 = scmp.eq.s32.totalorder %s14, 0
    %p56 = por %p54, %p55
    %p57 = scmp.ne.s32.totalorder %s45, %s46
    %p58 = scmp.eq.s32.totalorder %s15, 1
    %p59 = por %p57, %p58
    %p61 = scmp.ne.s32.totalorder %s46, %s60
    %p62 = scmp.eq.s32.totalorder %s15, 0
    %p63 = por %p61, %p62
    %s65 = sadd.s32 %s64, 1
    %p68 = scmp.eq.s32.totalorder %s9, 1
    %p69 = scmp.ne.s32.totalorder %s64, %s66
    %p70 = scmp.eq.s32.totalorder %s9, 0
    %p71 = por %p69, %p70
    %p72 = scmp.ne.s32.totalorder %s64, %s66
    %p73 = scmp.eq.s32.totalorder %s14, 1
    %p74 = por %p72, %p73
    %p75 = scmp.ne.s32.totalorder %s66, %s67
    %p76 = scmp.eq.s32.totalorder %s14, 0
    %p77 = por %p75, %p76
    %p78 = scmp.ne.s32.totalorder %s66, %s67
    %p79 = scmp.eq.s32.totalorder %s15, 1
    %p80 = por %p78, %p79
    %p82 = scmp.ne.s32.totalorder %s67, %s81
    %p83 = scmp.eq.s32.totalorder %s15, 0
    %p84 = por %p82, %p83
    %s85 = ssub.s32 %s9, %s16
    %p86 = scmp.eq.s32.totalorder %s85, 0
    %s88 = sadd.s32 %s87, 1
    %s89 = scalar_select %p86, %s87, %s88
    %p92 = pneg %p86
    %p93 = scmp.eq.s32.totalorder %s9, 1
    %p94 = por %p92, %p93
    %p95 = scmp.ne.s32.totalorder %s87, %s90
    %p96 = scmp.eq.s32.totalorder %s9, 0
    %p97 = por %p95, %p96
    %p98 = scmp.ne.s32.totalorder %s87, %s90
    %p99 = scmp.eq.s32.totalorder %s14, 1
    %p100 = por %p98, %p99
    %p101 = scmp.ne.s32.totalorder %s90, %s91
    %p102 = scmp.eq.s32.totalorder %s14, 0
    %p103 = por %p101, %p102
    %p104 = scmp.ne.s32.totalorder %s90, %s91
    %p105 = scmp.eq.s32.totalorder %s15, 1
    %p106 = por %p104, %p105
    %p108 = scmp.ne.s32.totalorder %s91, %s107
    %p109 = scmp.eq.s32.totalorder %s15, 0
    %p110 = por %p108, %p109
    %p111 = scmp.le.s32.totalorder 1, %s9
    %p112 = scmp.lt.s32.totalorder %s9, 3
    %p113 = pnand %p111, %p112
    %p114 = pneg %p113
    // Predicated region
    $region9: #{tpu_custom_call.1} parent=5 // pred_check
      _
    $region10: #{tpu_custom_call.1} parent=5 // pred_check_branch
      %116 = sbr.rel (%p113) target = $region12
    $region11: #{tpu_custom_call.1} parent=5 // pred_region
      %s117 = ssub.s32 %s9, 1
      // Predicated region
      $region13: #{tpu_custom_call.1} parent=11 // pred_check
        %p118 = pneg %p56
      $region14: #{tpu_custom_call.1} parent=11 // pred_check_branch
        %120 = sbr.rel (%p118) target = $region16
      $region15: #{tpu_custom_call.1} parent=11 // pred_region
        _
      $region16: #{tpu_custom_call.1} parent=11 // pred_fallthru
        _
      // Predicated region
      $region17: #{tpu_custom_call.1} parent=11 // pred_check
        %p121 = pneg %p77
      $region18: #{tpu_custom_call.1} parent=11 // pred_check_branch
        %123 = sbr.rel (%p121) target = $region20
      $region19: #{tpu_custom_call.1} parent=11 // pred_region
        _
      $region20: #{tpu_custom_call.1} parent=11 // pred_fallthru
        _
    $region12: #{tpu_custom_call.1} parent=5 // pred_fallthru
      _
    %p124 = scmp.lt.s32.totalorder %s9, 2
    // Predicated region
    $region21: #{tpu_custom_call.1} parent=5 // pred_check
      %p125 = pneg %p124
    $region22: #{tpu_custom_call.1} parent=5 // pred_check_branch
      %127 = sbr.rel (%p125) target = $region24
    $region23: #{tpu_custom_call.1} parent=5 // pred_region
      // Predicated region
      $region25: #{tpu_custom_call.1} parent=23 // pred_check
        %p128 = pneg %p29
      $region26: #{tpu_custom_call.1} parent=23 // pred_check_branch
        %130 = sbr.rel (%p128) target = $region28
      $region27: #{tpu_custom_call.1} parent=23 // pred_region
        %s131 = smul.u32 32, %s9
        %p132 = scmp.lt.s32.totalorder %s131, 63
        %s133 = scalar_select %p132, %s131, 63
        %s134 = smul.addr %s133, 7
        %s135 = smul.addr %s134, 8
        %s136 = scalar_lea.vmem %s0, %s135
        %s137 = smul.u32 32, %s9
      $region28: #{tpu_custom_call.1} parent=23 // pred_fallthru
        _
    $region24: #{tpu_custom_call.1} parent=5 // pred_fallthru
      _
    %p138 = scmp.le.s32.totalorder 1, %s9
    %p139 = scmp.lt.s32.totalorder %s9, 3
    %p140 = pnand %p138, %p139
    %p141 = pneg %p140
    // Predicated region
    $region29: #{tpu_custom_call.1} parent=5 // pred_check
      _
    $region30: #{tpu_custom_call.1} parent=5 // pred_check_branch
      %143 = sbr.rel (%p140) target = $region32
    $region31: #{tpu_custom_call.1} parent=5 // pred_region
      %s144 = ssub.s32 %s9, 1
      %s145 = smul.u32 32, %s14
      %p146 = scmp.lt.s32.totalorder %s145, 63
      %s147 = scalar_select %p146, %s145, 63
      %s148 = smul.addr %s147, 7
      %s149 = smul.addr %s148, 8
      %s150 = scalar_lea.vmem %s0, %s149
      %p151 = pneg %p35
      %p152 = pneg %p32
      %p153 = pneg %p56
      %p154 = pneg %p53
      %p155 = pneg %p77
      %p156 = pneg %p74
      %p157 = pneg %p103
      %p158 = pneg %p100
      %s159 = smul.u32 32, %s14
      %p160 = scmp.lt.s32.totalorder %s159, 63
      %s161 = scalar_select %p160, %s159, 63
      %s162 = smul.addr %s161, 7
      %s163 = smul.addr %s162, 8
      %s164 = scalar_lea.vmem %s3, %s163
      %s165 = smul.u32 32, %s14
      %p166 = scmp.lt.s32.totalorder %s165, 63
      %s167 = scalar_select %p166, %s165, 63
      %s168 = smul.addr %s167, 7
      %s169 = smul.addr %s168, 8
      %s170 = scalar_lea.vmem %s0, %s169
      %s171 = smul.u32 32, %s14
      %s172 = smul.u32 32, %s14
      %p173 = scmp.lt.s32.totalorder %s172, 63
      %s174 = scalar_select %p173, %s172, 63
      %s175 = smul.addr %s174, 7
      %s176 = smul.addr %s175, 8
      %s177 = scalar_lea.vmem %s3, %s176
      %s178 = smul.u32 32, %s14
      %s179 = smul.u32 %s14, 256
      %v180 = vld [vmem:[%s170] sm:$0xff]
      %v181 = vld [vmem:[%s170 + $0x8] sm:$0xff]
      %v182 = vld [vmem:[%s170 + $0x10] sm:$0xff]
      %v183 = vld [vmem:[%s170 + $0x18] sm:$0xff]
      %v184 = vld [vmem:[%s170 + $0x20] sm:$0xff]
      %v185 = vld [vmem:[%s170 + $0x28] sm:$0xff]
      %v186 = vld [vmem:[%s170 + $0x30] sm:$0xff]
      %v187 = vld [vmem:[%s170 + $0x38] sm:$0xff]
      %v188 = vld [vmem:[%s170 + $0x40] sm:$0xff]
      %v189 = vld [vmem:[%s170 + $0x48] sm:$0xff]
      %v190 = vld [vmem:[%s170 + $0x50] sm:$0xff]
      %v191 = vld [vmem:[%s170 + $0x58] sm:$0xff]
      %v192 = vld [vmem:[%s170 + $0x60] sm:$0xff]
      %v193 = vld [vmem:[%s170 + $0x68] sm:$0xff]
      %v194 = vld [vmem:[%s170 + $0x70] sm:$0xff]
      %v195 = vld [vmem:[%s170 + $0x78] sm:$0xff]
      %v196 = vld [vmem:[%s170 + $0x80] sm:$0xff]
      %v197 = vld [vmem:[%s170 + $0x88] sm:$0xff]
      %v198 = vld [vmem:[%s170 + $0x90] sm:$0xff]
      %v199 = vld [vmem:[%s170 + $0x98] sm:$0xff]
      %v200 = vld [vmem:[%s170 + $0xa0] sm:$0xff]
      %v201 = vld [vmem:[%s170 + $0xa8] sm:$0xff]
      %v202 = vld [vmem:[%s170 + $0xb0] sm:$0xff]
      %v203 = vld [vmem:[%s170 + $0xb8] sm:$0xff]
      %v204 = vld [vmem:[%s170 + $0xc0] sm:$0xff]
      %v205 = vld [vmem:[%s170 + $0xc8] sm:$0xff]
      %v206 = vld [vmem:[%s170 + $0xd0] sm:$0xff]
      %v207 = vld [vmem:[%s170 + $0xd8] sm:$0xff]
      %v208 = vld [vmem:[%s170 + $0xe0] sm:$0xff]
      %v209 = vld [vmem:[%s170 + $0xe8] sm:$0xff]
      %v210 = vld [vmem:[%s170 + $0xf0] sm:$0xff]
      %v211 = vld [vmem:[%s170 + $0xf8] sm:$0xff]
      %v212 = vld [vmem:[%s170 + $0x100] sm:$0xff]
      %v213 = vld [vmem:[%s170 + $0x108] sm:$0xff]
      %v214 = vld [vmem:[%s170 + $0x110] sm:$0xff]
      %v215 = vld [vmem:[%s170 + $0x118] sm:$0xff]
      %v216 = vld [vmem:[%s170 + $0x120] sm:$0xff]
      %v217 = vld [vmem:[%s170 + $0x128] sm:$0xff]
      %v218 = vld [vmem:[%s170 + $0x130] sm:$0xff]
      %v219 = vld [vmem:[%s170 + $0x138] sm:$0xff]
      %v220 = vld [vmem:[%s170 + $0x140] sm:$0xff]
      %v221 = vld [vmem:[%s170 + $0x148] sm:$0xff]
      %v222 = vld [vmem:[%s170 + $0x150] sm:$0xff]
      %v223 = vld [vmem:[%s170 + $0x158] sm:$0xff]
      %v224 = vld [vmem:[%s170 + $0x160] sm:$0xff]
      %v225 = vld [vmem:[%s170 + $0x168] sm:$0xff]
      %v226 = vld [vmem:[%s170 + $0x170] sm:$0xff]
      %v227 = vld [vmem:[%s170 + $0x178] sm:$0xff]
      %v228 = vld [vmem:[%s170 + $0x180] sm:$0xff]
      %v229 = vld [vmem:[%s170 + $0x188] sm:$0xff]
      %v230 = vld [vmem:[%s170 + $0x190] sm:$0xff]
      %v231 = vld [vmem:[%s170 + $0x198] sm:$0xff]
      %v232 = vld [vmem:[%s170 + $0x1a0] sm:$0xff]
      %v233 = vld [vmem:[%s170 + $0x1a8] sm:$0xff]
      %v234 = vld [vmem:[%s170 + $0x1b0] sm:$0xff]
      %v235 = vld [vmem:[%s170 + $0x1b8] sm:$0xff]
      %v236 = vld [vmem:[%s170 + $0x1c0] sm:$0xff]
      %v237 = vld [vmem:[%s170 + $0x1c8] sm:$0xff]
      %v238 = vld [vmem:[%s170 + $0x1d0] sm:$0xff]
      %v239 = vld [vmem:[%s170 + $0x1d8] sm:$0xff]
      %v240 = vld [vmem:[%s170 + $0x1e0] sm:$0xff]
      %v241 = vld [vmem:[%s170 + $0x1e8] sm:$0xff]
      %v242 = vld [vmem:[%s170 + $0x1f0] sm:$0xff]
      %v243 = vld [vmem:[%s170 + $0x1f8] sm:$0xff]
      %v244 = vld [vmem:[%s170 + $0x200] sm:$0xff]
      %v245 = vld [vmem:[%s170 + $0x208] sm:$0xff]
      %v246 = vld [vmem:[%s170 + $0x210] sm:$0xff]
      %v247 = vld [vmem:[%s170 + $0x218] sm:$0xff]
      %v248 = vld [vmem:[%s170 + $0x220] sm:$0xff]
      %v249 = vld [vmem:[%s170 + $0x228] sm:$0xff]
      %v250 = vld [vmem:[%s170 + $0x230] sm:$0xff]
      %v251 = vld [vmem:[%s170 + $0x238] sm:$0xff]
      %v252 = vld [vmem:[%s170 + $0x240] sm:$0xff]
      %v253 = vld [vmem:[%s170 + $0x248] sm:$0xff]
      %v254 = vld [vmem:[%s170 + $0x250] sm:$0xff]
      %v255 = vld [vmem:[%s170 + $0x258] sm:$0xff]
      %v256 = vld [vmem:[%s170 + $0x260] sm:$0xff]
      %v257 = vld [vmem:[%s170 + $0x268] sm:$0xff]
      %v258 = vld [vmem:[%s170 + $0x270] sm:$0xff]
      %v259 = vld [vmem:[%s170 + $0x278] sm:$0xff]
      %v260 = vld [vmem:[%s170 + $0x280] sm:$0xff]
      %v261 = vld [vmem:[%s170 + $0x288] sm:$0xff]
      %v262 = vld [vmem:[%s170 + $0x290] sm:$0xff]
      %v263 = vld [vmem:[%s170 + $0x298] sm:$0xff]
      %v264 = vld [vmem:[%s170 + $0x2a0] sm:$0xff]
      %v265 = vld [vmem:[%s170 + $0x2a8] sm:$0xff]
      %v266 = vld [vmem:[%s170 + $0x2b0] sm:$0xff]
      %v267 = vld [vmem:[%s170 + $0x2b8] sm:$0xff]
      %v268 = vld [vmem:[%s170 + $0x2c0] sm:$0xff]
      %v269 = vld [vmem:[%s170 + $0x2c8] sm:$0xff]
      %v270 = vld [vmem:[%s170 + $0x2d0] sm:$0xff]
      %v271 = vld [vmem:[%s170 + $0x2d8] sm:$0xff]
      %v272 = vld [vmem:[%s170 + $0x2e0] sm:$0xff]
      %v273 = vld [vmem:[%s170 + $0x2e8] sm:$0xff]
      %v274 = vld [vmem:[%s170 + $0x2f0] sm:$0xff]
      %v275 = vld [vmem:[%s170 + $0x2f8] sm:$0xff]
      %v276 = vld [vmem:[%s170 + $0x300] sm:$0xff]
      %v277 = vld [vmem:[%s170 + $0x308] sm:$0xff]
      %v278 = vld [vmem:[%s170 + $0x310] sm:$0xff]
      %v279 = vld [vmem:[%s170 + $0x318] sm:$0xff]
      %v280 = vld [vmem:[%s170 + $0x320] sm:$0xff]
      %v281 = vld [vmem:[%s170 + $0x328] sm:$0xff]
      %v282 = vld [vmem:[%s170 + $0x330] sm:$0xff]
      %v283 = vld [vmem:[%s170 + $0x338] sm:$0xff]
      %v284 = vld [vmem:[%s170 + $0x340] sm:$0xff]
      %v285 = vld [vmem:[%s170 + $0x348] sm:$0xff]
      %v286 = vld [vmem:[%s170 + $0x350] sm:$0xff]
      %v287 = vld [vmem:[%s170 + $0x358] sm:$0xff]
      %v288 = vld [vmem:[%s170 + $0x360] sm:$0xff]
      %v289 = vld [vmem:[%s170 + $0x368] sm:$0xff]
      %v290 = vld [vmem:[%s170 + $0x370] sm:$0xff]
      %v291 = vld [vmem:[%s170 + $0x378] sm:$0xff]
      %v292 = vld [vmem:[%s170 + $0x380] sm:$0xff]
      %v293 = vld [vmem:[%s170 + $0x388] sm:$0xff]
      %v294 = vld [vmem:[%s170 + $0x390] sm:$0xff]
      %v295 = vld [vmem:[%s170 + $0x398] sm:$0xff]
      %v296 = vld [vmem:[%s170 + $0x3a0] sm:$0xff]
      %v297 = vld [vmem:[%s170 + $0x3a8] sm:$0xff]
      %v298 = vld [vmem:[%s170 + $0x3b0] sm:$0xff]
      %v299 = vld [vmem:[%s170 + $0x3b8] sm:$0xff]
      %v300 = vld [vmem:[%s170 + $0x3c0] sm:$0xff]
      %v301 = vld [vmem:[%s170 + $0x3c8] sm:$0xff]
      %v302 = vld [vmem:[%s170 + $0x3d0] sm:$0xff]
      %v303 = vld [vmem:[%s170 + $0x3d8] sm:$0xff]
      %v304 = vld [vmem:[%s170 + $0x3e0] sm:$0xff]
      %v305 = vld [vmem:[%s170 + $0x3e8] sm:$0xff]
      %v306 = vld [vmem:[%s170 + $0x3f0] sm:$0xff]
      %v307 = vld [vmem:[%s170 + $0x3f8] sm:$0xff]
      %v308 = vld [vmem:[%s170 + $0x400] sm:$0xff]
      %v309 = vld [vmem:[%s170 + $0x408] sm:$0xff]
      %v310 = vld [vmem:[%s170 + $0x410] sm:$0xff]
      %v311 = vld [vmem:[%s170 + $0x418] sm:$0xff]
      %v312 = vld [vmem:[%s170 + $0x420] sm:$0xff]
      %v313 = vld [vmem:[%s170 + $0x428] sm:$0xff]
      %v314 = vld [vmem:[%s170 + $0x430] sm:$0xff]
      %v315 = vld [vmem:[%s170 + $0x438] sm:$0xff]
      %v316 = vld [vmem:[%s170 + $0x440] sm:$0xff]
      %v317 = vld [vmem:[%s170 + $0x448] sm:$0xff]
      %v318 = vld [vmem:[%s170 + $0x450] sm:$0xff]
      %v319 = vld [vmem:[%s170 + $0x458] sm:$0xff]
      %v320 = vld [vmem:[%s170 + $0x460] sm:$0xff]
      %v321 = vld [vmem:[%s170 + $0x468] sm:$0xff]
      %v322 = vld [vmem:[%s170 + $0x470] sm:$0xff]
      %v323 = vld [vmem:[%s170 + $0x478] sm:$0xff]
      %v324 = vld [vmem:[%s170 + $0x480] sm:$0xff]
      %v325 = vld [vmem:[%s170 + $0x488] sm:$0xff]
      %v326 = vld [vmem:[%s170 + $0x490] sm:$0xff]
      %v327 = vld [vmem:[%s170 + $0x498] sm:$0xff]
      %v328 = vld [vmem:[%s170 + $0x4a0] sm:$0xff]
      %v329 = vld [vmem:[%s170 + $0x4a8] sm:$0xff]
      %v330 = vld [vmem:[%s170 + $0x4b0] sm:$0xff]
      %v331 = vld [vmem:[%s170 + $0x4b8] sm:$0xff]
      %v332 = vld [vmem:[%s170 + $0x4c0] sm:$0xff]
      %v333 = vld [vmem:[%s170 + $0x4c8] sm:$0xff]
      %v334 = vld [vmem:[%s170 + $0x4d0] sm:$0xff]
      %v335 = vld [vmem:[%s170 + $0x4d8] sm:$0xff]
      %v336 = vld [vmem:[%s170 + $0x4e0] sm:$0xff]
      %v337 = vld [vmem:[%s170 + $0x4e8] sm:$0xff]
      %v338 = vld [vmem:[%s170 + $0x4f0] sm:$0xff]
      %v339 = vld [vmem:[%s170 + $0x4f8] sm:$0xff]
      %v340 = vld [vmem:[%s170 + $0x500] sm:$0xff]
      %v341 = vld [vmem:[%s170 + $0x508] sm:$0xff]
      %v342 = vld [vmem:[%s170 + $0x510] sm:$0xff]
      %v343 = vld [vmem:[%s170 + $0x518] sm:$0xff]
      %v344 = vld [vmem:[%s170 + $0x520] sm:$0xff]
      %v345 = vld [vmem:[%s170 + $0x528] sm:$0xff]
      %v346 = vld [vmem:[%s170 + $0x530] sm:$0xff]
      %v347 = vld [vmem:[%s170 + $0x538] sm:$0xff]
      %v348 = vld [vmem:[%s170 + $0x540] sm:$0xff]
      %v349 = vld [vmem:[%s170 + $0x548] sm:$0xff]
      %v350 = vld [vmem:[%s170 + $0x550] sm:$0xff]
      %v351 = vld [vmem:[%s170 + $0x558] sm:$0xff]
      %v352 = vld [vmem:[%s170 + $0x560] sm:$0xff]
      %v353 = vld [vmem:[%s170 + $0x568] sm:$0xff]
      %v354 = vld [vmem:[%s170 + $0x570] sm:$0xff]
      %v355 = vld [vmem:[%s170 + $0x578] sm:$0xff]
      %v356 = vld [vmem:[%s170 + $0x580] sm:$0xff]
      %v357 = vld [vmem:[%s170 + $0x588] sm:$0xff]
      %v358 = vld [vmem:[%s170 + $0x590] sm:$0xff]
      %v359 = vld [vmem:[%s170 + $0x598] sm:$0xff]
      %v360 = vld [vmem:[%s170 + $0x5a0] sm:$0xff]
      %v361 = vld [vmem:[%s170 + $0x5a8] sm:$0xff]
      %v362 = vld [vmem:[%s170 + $0x5b0] sm:$0xff]
      %v363 = vld [vmem:[%s170 + $0x5b8] sm:$0xff]
      %v364 = vld [vmem:[%s170 + $0x5c0] sm:$0xff]
      %v365 = vld [vmem:[%s170 + $0x5c8] sm:$0xff]
      %v366 = vld [vmem:[%s170 + $0x5d0] sm:$0xff]
      %v367 = vld [vmem:[%s170 + $0x5d8] sm:$0xff]
      %v368 = vld [vmem:[%s170 + $0x5e0] sm:$0xff]
      %v369 = vld [vmem:[%s170 + $0x5e8] sm:$0xff]
      %v370 = vld [vmem:[%s170 + $0x5f0] sm:$0xff]
      %v371 = vld [vmem:[%s170 + $0x5f8] sm:$0xff]
      %v372 = vld [vmem:[%s170 + $0x600] sm:$0xff]
      %v373 = vld [vmem:[%s170 + $0x608] sm:$0xff]
      %v374 = vld [vmem:[%s170 + $0x610] sm:$0xff]
      %v375 = vld [vmem:[%s170 + $0x618] sm:$0xff]
      %v376 = vld [vmem:[%s170 + $0x620] sm:$0xff]
      %v377 = vld [vmem:[%s170 + $0x628] sm:$0xff]
      %v378 = vld [vmem:[%s170 + $0x630] sm:$0xff]
      %v379 = vld [vmem:[%s170 + $0x638] sm:$0xff]
      %v380 = vld [vmem:[%s170 + $0x640] sm:$0xff]
      %v381 = vld [vmem:[%s170 + $0x648] sm:$0xff]
      %v382 = vld [vmem:[%s170 + $0x650] sm:$0xff]
      %v383 = vld [vmem:[%s170 + $0x658] sm:$0xff]
      %v384 = vld [vmem:[%s170 + $0x660] sm:$0xff]
      %v385 = vld [vmem:[%s170 + $0x668] sm:$0xff]
      %v386 = vld [vmem:[%s170 + $0x670] sm:$0xff]
      %v387 = vld [vmem:[%s170 + $0x678] sm:$0xff]
      %v388 = vld [vmem:[%s170 + $0x680] sm:$0xff]
      %v389 = vld [vmem:[%s170 + $0x688] sm:$0xff]
      %v390 = vld [vmem:[%s170 + $0x690] sm:$0xff]
      %v391 = vld [vmem:[%s170 + $0x698] sm:$0xff]
      %v392 = vld [vmem:[%s170 + $0x6a0] sm:$0xff]
      %v393 = vld [vmem:[%s170 + $0x6a8] sm:$0xff]
      %v394 = vld [vmem:[%s170 + $0x6b0] sm:$0xff]
      %v395 = vld [vmem:[%s170 + $0x6b8] sm:$0xff]
      %v396 = vld [vmem:[%s170 + $0x6c0] sm:$0xff]
      %v397 = vld [vmem:[%s170 + $0x6c8] sm:$0xff]
      %v398 = vld [vmem:[%s170 + $0x6d0] sm:$0xff]
      %v399 = vld [vmem:[%s170 + $0x6d8] sm:$0xff]
      %v400 = vld [vmem:[%s170 + $0x6e0] sm:$0xff]
      %v401 = vld [vmem:[%s170 + $0x6e8] sm:$0xff]
      %v402 = vld [vmem:[%s170 + $0x6f0] sm:$0xff]
      %v403 = vld [vmem:[%s170 + $0x6f8] sm:$0xff]
      %v404 = vadd.f32 %v180, %v181
      %v405 = vadd.f32 %v404, %v182
      %v406 = vadd.f32 %v405, %v183
      %v407 = vadd.f32 %v406, %v184
      %v408 = vadd.f32 %v407, %v185
      %vm409 = vcmask 130048
      %v410 = vsel %vm409, %v186, 0.0
      %v411 = vadd.f32 %v408, %v410
      %412 = vadd.xlane.f32.xlu0 %v411
      %v413 = vpop.xlane.xlu0 %412
      %v414 = vadd.f32 %v187, %v188
      %v415 = vadd.f32 %v414, %v189
      %v416 = vadd.f32 %v415, %v190
      %v417 = vadd.f32 %v416, %v191
      %v418 = vadd.f32 %v417, %v192
      %v419 = vsel %vm409, %v193, 0.0
      %v420 = vadd.f32 %v418, %v419
      %421 = vadd.xlane.f32.xlu0 %v420
      %v422 = vpop.xlane.xlu0 %421
      %v423 = vadd.f32 %v194, %v195
      %v424 = vadd.f32 %v423, %v196
      %v425 = vadd.f32 %v424, %v197
      %v426 = vadd.f32 %v425, %v198
      %v427 = vadd.f32 %v426, %v199
      %v428 = vsel %vm409, %v200, 0.0
      %v429 = vadd.f32 %v427, %v428
      %430 = vadd.xlane.f32.xlu0 %v429
      %v431 = vpop.xlane.xlu0 %430
      %v432 = vadd.f32 %v201, %v202
      %v433 = vadd.f32 %v432, %v203
      %v434 = vadd.f32 %v433, %v204
      %v435 = vadd.f32 %v434, %v205
      %v436 = vadd.f32 %v435, %v206
      %v437 = vsel %vm409, %v207, 0.0
      %v438 = vadd.f32 %v436, %v437
      %439 = vadd.xlane.f32.xlu0 %v438
      %v440 = vpop.xlane.xlu0 %439
      %v441 = vadd.f32 %v208, %v209
      %v442 = vadd.f32 %v441, %v210
      %v443 = vadd.f32 %v442, %v211
      %v444 = vadd.f32 %v443, %v212
      %v445 = vadd.f32 %v444, %v213
      %v446 = vsel %vm409, %v214, 0.0
      %v447 = vadd.f32 %v445, %v446
      %448 = vadd.xlane.f32.xlu0 %v447
      %v449 = vpop.xlane.xlu0 %448
      %v450 = vadd.f32 %v215, %v216
      %v451 = vadd.f32 %v450, %v217
      %v452 = vadd.f32 %v451, %v218
      %v453 = vadd.f32 %v452, %v219
      %v454 = vadd.f32 %v453, %v220
      %v455 = vsel %vm409, %v221, 0.0
      %v456 = vadd.f32 %v454, %v455
      %457 = vadd.xlane.f32.xlu0 %v456
      %v458 = vpop.xlane.xlu0 %457
      %v459 = vadd.f32 %v222, %v223
      %v460 = vadd.f32 %v459, %v224
      %v461 = vadd.f32 %v460, %v225
      %v462 = vadd.f32 %v461, %v226
      %v463 = vadd.f32 %v462, %v227
      %v464 = vsel %vm409, %v228, 0.0
      %v465 = vadd.f32 %v463, %v464
      %466 = vadd.xlane.f32.xlu0 %v465
      %v467 = vpop.xlane.xlu0 %466
      %v468 = vadd.f32 %v229, %v230
      %v469 = vadd.f32 %v468, %v231
      %v470 = vadd.f32 %v469, %v232
      %v471 = vadd.f32 %v470, %v233
      %v472 = vadd.f32 %v471, %v234
      %v473 = vsel %vm409, %v235, 0.0
      %v474 = vadd.f32 %v472, %v473
      %475 = vadd.xlane.f32.xlu0 %v474
      %v476 = vpop.xlane.xlu0 %475
      %v477 = vadd.f32 %v236, %v237
      %v478 = vadd.f32 %v477, %v238
      %v479 = vadd.f32 %v478, %v239
      %v480 = vadd.f32 %v479, %v240
      %v481 = vadd.f32 %v480, %v241
      %v482 = vsel %vm409, %v242, 0.0
      %v483 = vadd.f32 %v481, %v482
      %484 = vadd.xlane.f32.xlu0 %v483
      %v485 = vpop.xlane.xlu0 %484
      %v486 = vadd.f32 %v243, %v244
      %v487 = vadd.f32 %v486, %v245
      %v488 = vadd.f32 %v487, %v246
      %v489 = vadd.f32 %v488, %v247
      %v490 = vadd.f32 %v489, %v248
      %v491 = vsel %vm409, %v249, 0.0
      %v492 = vadd.f32 %v490, %v491
      %493 = vadd.xlane.f32.xlu0 %v492
      %v494 = vpop.xlane.xlu0 %493
      %v495 = vadd.f32 %v250, %v251
      %v496 = vadd.f32 %v495, %v252
      %v497 = vadd.f32 %v496, %v253
      %v498 = vadd.f32 %v497, %v254
      %v499 = vadd.f32 %v498, %v255
      %v500 = vsel %vm409, %v256, 0.0
      %v501 = vadd.f32 %v499, %v500
      %502 = vadd.xlane.f32.xlu0 %v501
      %v503 = vpop.xlane.xlu0 %502
      %v504 = vadd.f32 %v257, %v258
      %v505 = vadd.f32 %v504, %v259
      %v506 = vadd.f32 %v505, %v260
      %v507 = vadd.f32 %v506, %v261
      %v508 = vadd.f32 %v507, %v262
      %v509 = vsel %vm409, %v263, 0.0
      %v510 = vadd.f32 %v508, %v509
      %511 = vadd.xlane.f32.xlu0 %v510
      %v512 = vpop.xlane.xlu0 %511
      %v513 = vadd.f32 %v264, %v265
      %v514 = vadd.f32 %v513, %v266
      %v515 = vadd.f32 %v514, %v267
      %v516 = vadd.f32 %v515, %v268
      %v517 = vadd.f32 %v516, %v269
      %v518 = vsel %vm409, %v270, 0.0
      %v519 = vadd.f32 %v517, %v518
      %520 = vadd.xlane.f32.xlu0 %v519
      %v521 = vpop.xlane.xlu0 %520
      %v522 = vadd.f32 %v271, %v272
      %v523 = vadd.f32 %v522, %v273
      %v524 = vadd.f32 %v523, %v274
      %v525 = vadd.f32 %v524, %v275
      %v526 = vadd.f32 %v525, %v276
      %v527 = vsel %vm409, %v277, 0.0
      %v528 = vadd.f32 %v526, %v527
      %529 = vadd.xlane.f32.xlu0 %v528
      %v530 = vpop.xlane.xlu0 %529
      %v531 = vadd.f32 %v278, %v279
      %v532 = vadd.f32 %v531, %v280
      %v533 = vadd.f32 %v532, %v281
      %v534 = vadd.f32 %v533, %v282
      %v535 = vadd.f32 %v534, %v283
      %v536 = vsel %vm409, %v284, 0.0
      %v537 = vadd.f32 %v535, %v536
      %538 = vadd.xlane.f32.xlu0 %v537
      %v539 = vpop.xlane.xlu0 %538
      %v540 = vadd.f32 %v285, %v286
      %v541 = vadd.f32 %v540, %v287
      %v542 = vadd.f32 %v541, %v288
      %v543 = vadd.f32 %v542, %v289
      %v544 = vadd.f32 %v543, %v290
      %v545 = vsel %vm409, %v291, 0.0
      %v546 = vadd.f32 %v544, %v545
      %547 = vadd.xlane.f32.xlu0 %v546
      %v548 = vpop.xlane.xlu0 %547
      %v549 = vadd.f32 %v292, %v293
      %v550 = vadd.f32 %v549, %v294
      %v551 = vadd.f32 %v550, %v295
      %v552 = vadd.f32 %v551, %v296
      %v553 = vadd.f32 %v552, %v297
      %v554 = vsel %vm409, %v298, 0.0
      %v555 = vadd.f32 %v553, %v554
      %556 = vadd.xlane.f32.xlu0 %v555
      %v557 = vpop.xlane.xlu0 %556
      %v558 = vadd.f32 %v299, %v300
      %v559 = vadd.f32 %v558, %v301
      %v560 = vadd.f32 %v559, %v302
      %v561 = vadd.f32 %v560, %v303
      %v562 = vadd.f32 %v561, %v304
      %v563 = vsel %vm409, %v305, 0.0
      %v564 = vadd.f32 %v562, %v563
      %565 = vadd.xlane.f32.xlu0 %v564
      %v566 = vpop.xlane.xlu0 %565
      %v567 = vadd.f32 %v306, %v307
      %v568 = vadd.f32 %v567, %v308
      %v569 = vadd.f32 %v568, %v309
      %v570 = vadd.f32 %v569, %v310
      %v571 = vadd.f32 %v570, %v311
      %v572 = vsel %vm409, %v312, 0.0
      %v573 = vadd.f32 %v571, %v572
      %574 = vadd.xlane.f32.xlu0 %v573
      %v575 = vpop.xlane.xlu0 %574
      %v576 = vadd.f32 %v313, %v314
      %v577 = vadd.f32 %v576, %v315
      %v578 = vadd.f32 %v577, %v316
      %v579 = vadd.f32 %v578, %v317
      %v580 = vadd.f32 %v579, %v318
      %v581 = vsel %vm409, %v319, 0.0
      %v582 = vadd.f32 %v580, %v581
      %583 = vadd.xlane.f32.xlu0 %v582
      %v584 = vpop.xlane.xlu0 %583
      %v585 = vadd.f32 %v320, %v321
      %v586 = vadd.f32 %v585, %v322
      %v587 = vadd.f32 %v586, %v323
      %v588 = vadd.f32 %v587, %v324
      %v589 = vadd.f32 %v588, %v325
      %v590 = vsel %vm409, %v326, 0.0
      %v591 = vadd.f32 %v589, %v590
      %592 = vadd.xlane.f32.xlu0 %v591
      %v593 = vpop.xlane.xlu0 %592
      %v594 = vadd.f32 %v327, %v328
      %v595 = vadd.f32 %v594, %v329
      %v596 = vadd.f32 %v595, %v330
      %v597 = vadd.f32 %v596, %v331
      %v598 = vadd.f32 %v597, %v332
      %v599 = vsel %vm409, %v333, 0.0
      %v600 = vadd.f32 %v598, %v599
      %601 = vadd.xlane.f32.xlu0 %v600
      %v602 = vpop.xlane.xlu0 %601
      %v603 = vadd.f32 %v334, %v335
      %v604 = vadd.f32 %v603, %v336
      %v605 = vadd.f32 %v604, %v337
      %v606 = vadd.f32 %v605, %v338
      %v607 = vadd.f32 %v606, %v339
      %v608 = vsel %vm409, %v340, 0.0
      %v609 = vadd.f32 %v607, %v608
      %610 = vadd.xlane.f32.xlu0 %v609
      %v611 = vpop.xlane.xlu0 %610
      %v612 = vadd.f32 %v341, %v342
      %v613 = vadd.f32 %v612, %v343
      %v614 = vadd.f32 %v613, %v344
      %v615 = vadd.f32 %v614, %v345
      %v616 = vadd.f32 %v615, %v346
      %v617 = vsel %vm409, %v347, 0.0
      %v618 = vadd.f32 %v616, %v617
      %619 = vadd.xlane.f32.xlu0 %v618
      %v620 = vpop.xlane.xlu0 %619
      %v621 = vadd.f32 %v348, %v349
      %v622 = vadd.f32 %v621, %v350
      %v623 = vadd.f32 %v622, %v351
      %v624 = vadd.f32 %v623, %v352
      %v625 = vadd.f32 %v624, %v353
      %v626 = vsel %vm409, %v354, 0.0
      %v627 = vadd.f32 %v625, %v626
      %628 = vadd.xlane.f32.xlu0 %v627
      %v629 = vpop.xlane.xlu0 %628
      %v630 = vadd.f32 %v355, %v356
      %v631 = vadd.f32 %v630, %v357
      %v632 = vadd.f32 %v631, %v358
      %v633 = vadd.f32 %v632, %v359
      %v634 = vadd.f32 %v633, %v360
      %v635 = vsel %vm409, %v361, 0.0
      %v636 = vadd.f32 %v634, %v635
      %637 = vadd.xlane.f32.xlu0 %v636
      %v638 = vpop.xlane.xlu0 %637
      %v639 = vadd.f32 %v362, %v363
      %v640 = vadd.f32 %v639, %v364
      %v641 = vadd.f32 %v640, %v365
      %v642 = vadd.f32 %v641, %v366
      %v643 = vadd.f32 %v642, %v367
      %v644 = vsel %vm409, %v368, 0.0
      %v645 = vadd.f32 %v643, %v644
      %646 = vadd.xlane.f32.xlu0 %v645
      %v647 = vpop.xlane.xlu0 %646
      %v648 = vadd.f32 %v369, %v370
      %v649 = vadd.f32 %v648, %v371
      %v650 = vadd.f32 %v649, %v372
      %v651 = vadd.f32 %v650, %v373
      %v652 = vadd.f32 %v651, %v374
      %v653 = vsel %vm409, %v375, 0.0
      %v654 = vadd.f32 %v652, %v653
      %655 = vadd.xlane.f32.xlu0 %v654
      %v656 = vpop.xlane.xlu0 %655
      %v657 = vadd.f32 %v376, %v377
      %v658 = vadd.f32 %v657, %v378
      %v659 = vadd.f32 %v658, %v379
      %v660 = vadd.f32 %v659, %v380
      %v661 = vadd.f32 %v660, %v381
      %v662 = vsel %vm409, %v382, 0.0
      %v663 = vadd.f32 %v661, %v662
      %664 = vadd.xlane.f32.xlu0 %v663
      %v665 = vpop.xlane.xlu0 %664
      %v666 = vadd.f32 %v383, %v384
      %v667 = vadd.f32 %v666, %v385
      %v668 = vadd.f32 %v667, %v386
      %v669 = vadd.f32 %v668, %v387
      %v670 = vadd.f32 %v669, %v388
      %v671 = vsel %vm409, %v389, 0.0
      %v672 = vadd.f32 %v670, %v671
      %673 = vadd.xlane.f32.xlu0 %v672
      %v674 = vpop.xlane.xlu0 %673
      %v675 = vadd.f32 %v390, %v391
      %v676 = vadd.f32 %v675, %v392
      %v677 = vadd.f32 %v676, %v393
      %v678 = vadd.f32 %v677, %v394
      %v679 = vadd.f32 %v678, %v395
      %v680 = vsel %vm409, %v396, 0.0
      %v681 = vadd.f32 %v679, %v680
      %682 = vadd.xlane.f32.xlu0 %v681
      %v683 = vpop.xlane.xlu0 %682
      %v684 = vadd.f32 %v397, %v398
      %v685 = vadd.f32 %v684, %v399
      %v686 = vadd.f32 %v685, %v400
      %v687 = vadd.f32 %v686, %v401
      %v688 = vadd.f32 %v687, %v402
      %v689 = vsel %vm409, %v403, 0.0
      %v690 = vadd.f32 %v688, %v689
      %691 = vadd.xlane.f32.xlu0 %v690
      %v692 = vpop.xlane.xlu0 %691
      %v693 = vmul.f32 %v180, %v180
      %v694 = vmul.f32 %v181, %v181
      %v695 = vmul.f32 %v182, %v182
      %v696 = vmul.f32 %v183, %v183
      %v697 = vmul.f32 %v184, %v184
      %v698 = vmul.f32 %v185, %v185
      %v699 = vmul.f32 %v186, %v186
      %v700 = vmul.f32 %v187, %v187
      %v701 = vmul.f32 %v188, %v188
      %v702 = vmul.f32 %v189, %v189
      %v703 = vmul.f32 %v190, %v190
      %v704 = vmul.f32 %v191, %v191
      %v705 = vmul.f32 %v192, %v192
      %v706 = vmul.f32 %v193, %v193
      %v707 = vmul.f32 %v194, %v194
      %v708 = vmul.f32 %v195, %v195
      %v709 = vmul.f32 %v196, %v196
      %v710 = vmul.f32 %v197, %v197
      %v711 = vmul.f32 %v198, %v198
      %v712 = vmul.f32 %v199, %v199
      %v713 = vmul.f32 %v200, %v200
      %v714 = vmul.f32 %v201, %v201
      %v715 = vmul.f32 %v202, %v202
      %v716 = vmul.f32 %v203, %v203
      %v717 = vmul.f32 %v204, %v204
      %v718 = vmul.f32 %v205, %v205
      %v719 = vmul.f32 %v206, %v206
      %v720 = vmul.f32 %v207, %v207
      %v721 = vmul.f32 %v208, %v208
      %v722 = vmul.f32 %v209, %v209
      %v723 = vmul.f32 %v210, %v210
      %v724 = vmul.f32 %v211, %v211
      %v725 = vmul.f32 %v212, %v212
      %v726 = vmul.f32 %v213, %v213
      %v727 = vmul.f32 %v214, %v214
      %v728 = vmul.f32 %v215, %v215
      %v729 = vmul.f32 %v216, %v216
      %v730 = vmul.f32 %v217, %v217
      %v731 = vmul.f32 %v218, %v218
      %v732 = vmul.f32 %v219, %v219
      %v733 = vmul.f32 %v220, %v220
      %v734 = vmul.f32 %v221, %v221
      %v735 = vmul.f32 %v222, %v222
      %v736 = vmul.f32 %v223, %v223
      %v737 = vmul.f32 %v224, %v224
      %v738 = vmul.f32 %v225, %v225
      %v739 = vmul.f32 %v226, %v226
      %v740 = vmul.f32 %v227, %v227
      %v741 = vmul.f32 %v228, %v228
      %v742 = vmul.f32 %v229, %v229
      %v743 = vmul.f32 %v230, %v230
      %v744 = vmul.f32 %v231, %v231
      %v745 = vmul.f32 %v232, %v232
      %v746 = vmul.f32 %v233, %v233
      %v747 = vmul.f32 %v234, %v234
      %v748 = vmul.f32 %v235, %v235
      %v749 = vmul.f32 %v236, %v236
      %v750 = vmul.f32 %v237, %v237
      %v751 = vmul.f32 %v238, %v238
      %v752 = vmul.f32 %v239, %v239
      %v753 = vmul.f32 %v240, %v240
      %v754 = vmul.f32 %v241, %v241
      %v755 = vmul.f32 %v242, %v242
      %v756 = vmul.f32 %v243, %v243
      %v757 = vmul.f32 %v244, %v244
      %v758 = vmul.f32 %v245, %v245
      %v759 = vmul.f32 %v246, %v246
      %v760 = vmul.f32 %v247, %v247
      %v761 = vmul.f32 %v248, %v248
      %v762 = vmul.f32 %v249, %v249
      %v763 = vmul.f32 %v250, %v250
      %v764 = vmul.f32 %v251, %v251
      %v765 = vmul.f32 %v252, %v252
      %v766 = vmul.f32 %v253, %v253
      %v767 = vmul.f32 %v254, %v254
      %v768 = vmul.f32 %v255, %v255
      %v769 = vmul.f32 %v256, %v256
      %v770 = vmul.f32 %v257, %v257
      %v771 = vmul.f32 %v258, %v258
      %v772 = vmul.f32 %v259, %v259
      %v773 = vmul.f32 %v260, %v260
      %v774 = vmul.f32 %v261, %v261
      %v775 = vmul.f32 %v262, %v262
      %v776 = vmul.f32 %v263, %v263
      %v777 = vmul.f32 %v264, %v264
      %v778 = vmul.f32 %v265, %v265
      %v779 = vmul.f32 %v266, %v266
      %v780 = vmul.f32 %v267, %v267
      %v781 = vmul.f32 %v268, %v268
      %v782 = vmul.f32 %v269, %v269
      %v783 = vmul.f32 %v270, %v270
      %v784 = vmul.f32 %v271, %v271
      %v785 = vmul.f32 %v272, %v272
      %v786 = vmul.f32 %v273, %v273
      %v787 = vmul.f32 %v274, %v274
      %v788 = vmul.f32 %v275, %v275
      %v789 = vmul.f32 %v276, %v276
      %v790 = vmul.f32 %v277, %v277
      %v791 = vmul.f32 %v278, %v278
      %v792 = vmul.f32 %v279, %v279
      %v793 = vmul.f32 %v280, %v280
      %v794 = vmul.f32 %v281, %v281
      %v795 = vmul.f32 %v282, %v282
      %v796 = vmul.f32 %v283, %v283
      %v797 = vmul.f32 %v284, %v284
      %v798 = vmul.f32 %v285, %v285
      %v799 = vmul.f32 %v286, %v286
      %v800 = vmul.f32 %v287, %v287
      %v801 = vmul.f32 %v288, %v288
      %v802 = vmul.f32 %v289, %v289
      %v803 = vmul.f32 %v290, %v290
      %v804 = vmul.f32 %v291, %v291
      %v805 = vmul.f32 %v292, %v292
      %v806 = vmul.f32 %v293, %v293
      %v807 = vmul.f32 %v294, %v294
      %v808 = vmul.f32 %v295, %v295
      %v809 = vmul.f32 %v296, %v296
      %v810 = vmul.f32 %v297, %v297
      %v811 = vmul.f32 %v298, %v298
      %v812 = vmul.f32 %v299, %v299
      %v813 = vmul.f32 %v300, %v300
      %v814 = vmul.f32 %v301, %v301
      %v815 = vmul.f32 %v302, %v302
      %v816 = vmul.f32 %v303, %v303
      %v817 = vmul.f32 %v304, %v304
      %v818 = vmul.f32 %v305, %v305
      %v819 = vmul.f32 %v306, %v306
      %v820 = vmul.f32 %v307, %v307
      %v821 = vmul.f32 %v308, %v308
      %v822 = vmul.f32 %v309, %v309
      %v823 = vmul.f32 %v310, %v310
      %v824 = vmul.f32 %v311, %v311
      %v825 = vmul.f32 %v312, %v312
      %v826 = vmul.f32 %v313, %v313
      %v827 = vmul.f32 %v314, %v314
      %v828 = vmul.f32 %v315, %v315
      %v829 = vmul.f32 %v316, %v316
      %v830 = vmul.f32 %v317, %v317
      %v831 = vmul.f32 %v318, %v318
      %v832 = vmul.f32 %v319, %v319
      %v833 = vmul.f32 %v320, %v320
      %v834 = vmul.f32 %v321, %v321
      %v835 = vmul.f32 %v322, %v322
      %v836 = vmul.f32 %v323, %v323
      %v837 = vmul.f32 %v324, %v324
      %v838 = vmul.f32 %v325, %v325
      %v839 = vmul.f32 %v326, %v326
      %v840 = vmul.f32 %v327, %v327
      %v841 = vmul.f32 %v328, %v328
      %v842 = vmul.f32 %v329, %v329
      %v843 = vmul.f32 %v330, %v330
      %v844 = vmul.f32 %v331, %v331
      %v845 = vmul.f32 %v332, %v332
      %v846 = vmul.f32 %v333, %v333
      %v847 = vmul.f32 %v334, %v334
      %v848 = vmul.f32 %v335, %v335
      %v849 = vmul.f32 %v336, %v336
      %v850 = vmul.f32 %v337, %v337
      %v851 = vmul.f32 %v338, %v338
      %v852 = vmul.f32 %v339, %v339
      %v853 = vmul.f32 %v340, %v340
      %v854 = vmul.f32 %v341, %v341
      %v855 = vmul.f32 %v342, %v342
      %v856 = vmul.f32 %v343, %v343
      %v857 = vmul.f32 %v344, %v344
      %v858 = vmul.f32 %v345, %v345
      %v859 = vmul.f32 %v346, %v346
      %v860 = vmul.f32 %v347, %v347
      %v861 = vmul.f32 %v348, %v348
      %v862 = vmul.f32 %v349, %v349
      %v863 = vmul.f32 %v350, %v350
      %v864 = vmul.f32 %v351, %v351
      %v865 = vmul.f32 %v352, %v352
      %v866 = vmul.f32 %v353, %v353
      %v867 = vmul.f32 %v354, %v354
      %v868 = vmul.f32 %v355, %v355
      %v869 = vmul.f32 %v356, %v356
      %v870 = vmul.f32 %v357, %v357
      %v871 = vmul.f32 %v358, %v358
      %v872 = vmul.f32 %v359, %v359
      %v873 = vmul.f32 %v360, %v360
      %v874 = vmul.f32 %v361, %v361
      %v875 = vmul.f32 %v362, %v362
      %v876 = vmul.f32 %v363, %v363
      %v877 = vmul.f32 %v364, %v364
      %v878 = vmul.f32 %v365, %v365
      %v879 = vmul.f32 %v366, %v366
      %v880 = vmul.f32 %v367, %v367
      %v881 = vmul.f32 %v368, %v368
      %v882 = vmul.f32 %v369, %v369
      %v883 = vmul.f32 %v370, %v370
      %v884 = vmul.f32 %v371, %v371
      %v885 = vmul.f32 %v372, %v372
      %v886 = vmul.f32 %v373, %v373
      %v887 = vmul.f32 %v374, %v374
      %v888 = vmul.f32 %v375, %v375
      %v889 = vmul.f32 %v376, %v376
      %v890 = vmul.f32 %v377, %v377
      %v891 = vmul.f32 %v378, %v378
      %v892 = vmul.f32 %v379, %v379
      %v893 = vmul.f32 %v380, %v380
      %v894 = vmul.f32 %v381, %v381
      %v895 = vmul.f32 %v382, %v382
      %v896 = vmul.f32 %v383, %v383
      %v897 = vmul.f32 %v384, %v384
      %v898 = vmul.f32 %v385, %v385
      %v899 = vmul.f32 %v386, %v386
      %v900 = vmul.f32 %v387, %v387
      %v901 = vmul.f32 %v388, %v388
      %v902 = vmul.f32 %v389, %v389
      %v903 = vmul.f32 %v390, %v390
      %v904 = vmul.f32 %v391, %v391
      %v905 = vmul.f32 %v392, %v392
      %v906 = vmul.f32 %v393, %v393
      %v907 = vmul.f32 %v394, %v394
      %v908 = vmul.f32 %v395, %v395
      %v909 = vmul.f32 %v396, %v396
      %v910 = vmul.f32 %v397, %v397
      %v911 = vmul.f32 %v398, %v398
      %v912 = vmul.f32 %v399, %v399
      %v913 = vmul.f32 %v400, %v400
      %v914 = vmul.f32 %v401, %v401
      %v915 = vmul.f32 %v402, %v402
      %v916 = vmul.f32 %v403, %v403
      %v917 = vadd.f32 %v693, %v694
      %v918 = vadd.f32 %v917, %v695
      %v919 = vadd.f32 %v918, %v696
      %v920 = vadd.f32 %v919, %v697
      %v921 = vadd.f32 %v920, %v698
      %v922 = vsel %vm409, %v699, 0.0
      %v923 = vadd.f32 %v921, %v922
      %924 = vadd.xlane.f32.xlu0 %v923
      %v925 = vpop.xlane.xlu0 %924
      %v926 = vadd.f32 %v700, %v701
      %v927 = vadd.f32 %v926, %v702
      %v928 = vadd.f32 %v927, %v703
      %v929 = vadd.f32 %v928, %v704
      %v930 = vadd.f32 %v929, %v705
      %v931 = vsel %vm409, %v706, 0.0
      %v932 = vadd.f32 %v930, %v931
      %933 = vadd.xlane.f32.xlu0 %v932
      %v934 = vpop.xlane.xlu0 %933
      %v935 = vadd.f32 %v707, %v708
      %v936 = vadd.f32 %v935, %v709
      %v937 = vadd.f32 %v936, %v710
      %v938 = vadd.f32 %v937, %v711
      %v939 = vadd.f32 %v938, %v712
      %v940 = vsel %vm409, %v713, 0.0
      %v941 = vadd.f32 %v939, %v940
      %942 = vadd.xlane.f32.xlu0 %v941
      %v943 = vpop.xlane.xlu0 %942
      %v944 = vadd.f32 %v714, %v715
      %v945 = vadd.f32 %v944, %v716
      %v946 = vadd.f32 %v945, %v717
      %v947 = vadd.f32 %v946, %v718
      %v948 = vadd.f32 %v947, %v719
      %v949 = vsel %vm409, %v720, 0.0
      %v950 = vadd.f32 %v948, %v949
      %951 = vadd.xlane.f32.xlu0 %v950
      %v952 = vpop.xlane.xlu0 %951
      %v953 = vadd.f32 %v721, %v722
      %v954 = vadd.f32 %v953, %v723
      %v955 = vadd.f32 %v954, %v724
      %v956 = vadd.f32 %v955, %v725
      %v957 = vadd.f32 %v956, %v726
      %v958 = vsel %vm409, %v727, 0.0
      %v959 = vadd.f32 %v957, %v958
      %960 = vadd.xlane.f32.xlu0 %v959
      %v961 = vpop.xlane.xlu0 %960
      %v962 = vadd.f32 %v728, %v729
      %v963 = vadd.f32 %v962, %v730
      %v964 = vadd.f32 %v963, %v731
      %v965 = vadd.f32 %v964, %v732
      %v966 = vadd.f32 %v965, %v733
      %v967 = vsel %vm409, %v734, 0.0
      %v968 = vadd.f32 %v966, %v967
      %969 = vadd.xlane.f32.xlu0 %v968
      %v970 = vpop.xlane.xlu0 %969
      %v971 = vadd.f32 %v735, %v736
      %v972 = vadd.f32 %v971, %v737
      %v973 = vadd.f32 %v972, %v738
      %v974 = vadd.f32 %v973, %v739
      %v975 = vadd.f32 %v974, %v740
      %v976 = vsel %vm409, %v741, 0.0
      %v977 = vadd.f32 %v975, %v976
      %978 = vadd.xlane.f32.xlu0 %v977
      %v979 = vpop.xlane.xlu0 %978
      %v980 = vadd.f32 %v742, %v743
      %v981 = vadd.f32 %v980, %v744
      %v982 = vadd.f32 %v981, %v745
      %v983 = vadd.f32 %v982, %v746
      %v984 = vadd.f32 %v983, %v747
      %v985 = vsel %vm409, %v748, 0.0
      %v986 = vadd.f32 %v984, %v985
      %987 = vadd.xlane.f32.xlu0 %v986
      %v988 = vpop.xlane.xlu0 %987
      %v989 = vadd.f32 %v749, %v750
      %v990 = vadd.f32 %v989, %v751
      %v991 = vadd.f32 %v990, %v752
      %v992 = vadd.f32 %v991, %v753
      %v993 = vadd.f32 %v992, %v754
      %v994 = vsel %vm409, %v755, 0.0
      %v995 = vadd.f32 %v993, %v994
      %996 = vadd.xlane.f32.xlu0 %v995
      %v997 = vpop.xlane.xlu0 %996
      %v998 = vadd.f32 %v756, %v757
      %v999 = vadd.f32 %v998, %v758
      %v1000 = vadd.f32 %v999, %v759
      %v1001 = vadd.f32 %v1000, %v760
      %v1002 = vadd.f32 %v1001, %v761
      %v1003 = vsel %vm409, %v762, 0.0
      %v1004 = vadd.f32 %v1002, %v1003
      %1005 = vadd.xlane.f32.xlu0 %v1004
      %v1006 = vpop.xlane.xlu0 %1005
      %v1007 = vadd.f32 %v763, %v764
      %v1008 = vadd.f32 %v1007, %v765
      %v1009 = vadd.f32 %v1008, %v766
      %v1010 = vadd.f32 %v1009, %v767
      %v1011 = vadd.f32 %v1010, %v768
      %v1012 = vsel %vm409, %v769, 0.0
      %v1013 = vadd.f32 %v1011, %v1012
      %1014 = vadd.xlane.f32.xlu0 %v1013
      %v1015 = vpop.xlane.xlu0 %1014
      %v1016 = vadd.f32 %v770, %v771
      %v1017 = vadd.f32 %v1016, %v772
      %v1018 = vadd.f32 %v1017, %v773
      %v1019 = vadd.f32 %v1018, %v774
      %v1020 = vadd.f32 %v1019, %v775
      %v1021 = vsel %vm409, %v776, 0.0
      %v1022 = vadd.f32 %v1020, %v1021
      %1023 = vadd.xlane.f32.xlu0 %v1022
      %v1024 = vpop.xlane.xlu0 %1023
      %v1025 = vadd.f32 %v777, %v778
      %v1026 = vadd.f32 %v1025, %v779
      %v1027 = vadd.f32 %v1026, %v780
      %v1028 = vadd.f32 %v1027, %v781
      %v1029 = vadd.f32 %v1028, %v782
      %v1030 = vsel %vm409, %v783, 0.0
      %v1031 = vadd.f32 %v1029, %v1030
      %1032 = vadd.xlane.f32.xlu0 %v1031
      %v1033 = vpop.xlane.xlu0 %1032
      %v1034 = vadd.f32 %v784, %v785
      %v1035 = vadd.f32 %v1034, %v786
      %v1036 = vadd.f32 %v1035, %v787
      %v1037 = vadd.f32 %v1036, %v788
      %v1038 = vadd.f32 %v1037, %v789
      %v1039 = vsel %vm409, %v790, 0.0
      %v1040 = vadd.f32 %v1038, %v1039
      %1041 = vadd.xlane.f32.xlu0 %v1040
      %v1042 = vpop.xlane.xlu0 %1041
      %v1043 = vadd.f32 %v791, %v792
      %v1044 = vadd.f32 %v1043, %v793
      %v1045 = vadd.f32 %v1044, %v794
      %v1046 = vadd.f32 %v1045, %v795
      %v1047 = vadd.f32 %v1046, %v796
      %v1048 = vsel %vm409, %v797, 0.0
      %v1049 = vadd.f32 %v1047, %v1048
      %1050 = vadd.xlane.f32.xlu0 %v1049
      %v1051 = vpop.xlane.xlu0 %1050
      %v1052 = vadd.f32 %v798, %v799
      %v1053 = vadd.f32 %v1052, %v800
      %v1054 = vadd.f32 %v1053, %v801
      %v1055 = vadd.f32 %v1054, %v802
      %v1056 = vadd.f32 %v1055, %v803
      %v1057 = vsel %vm409, %v804, 0.0
      %v1058 = vadd.f32 %v1056, %v1057
      %1059 = vadd.xlane.f32.xlu0 %v1058
      %v1060 = vpop.xlane.xlu0 %1059
      %v1061 = vadd.f32 %v805, %v806
      %v1062 = vadd.f32 %v1061, %v807
      %v1063 = vadd.f32 %v1062, %v808
      %v1064 = vadd.f32 %v1063, %v809
      %v1065 = vadd.f32 %v1064, %v810
      %v1066 = vsel %vm409, %v811, 0.0
      %v1067 = vadd.f32 %v1065, %v1066
      %1068 = vadd.xlane.f32.xlu0 %v1067
      %v1069 = vpop.xlane.xlu0 %1068
      %v1070 = vadd.f32 %v812, %v813
      %v1071 = vadd.f32 %v1070, %v814
      %v1072 = vadd.f32 %v1071, %v815
      %v1073 = vadd.f32 %v1072, %v816
      %v1074 = vadd.f32 %v1073, %v817
      %v1075 = vsel %vm409, %v818, 0.0
      %v1076 = vadd.f32 %v1074, %v1075
      %1077 = vadd.xlane.f32.xlu0 %v1076
      %v1078 = vpop.xlane.xlu0 %1077
      %v1079 = vadd.f32 %v819, %v820
      %v1080 = vadd.f32 %v1079, %v821
      %v1081 = vadd.f32 %v1080, %v822
      %v1082 = vadd.f32 %v1081, %v823
      %v1083 = vadd.f32 %v1082, %v824
      %v1084 = vsel %vm409, %v825, 0.0
      %v1085 = vadd.f32 %v1083, %v1084
      %1086 = vadd.xlane.f32.xlu0 %v1085
      %v1087 = vpop.xlane.xlu0 %1086
      %v1088 = vadd.f32 %v826, %v827
      %v1089 = vadd.f32 %v1088, %v828
      %v1090 = vadd.f32 %v1089, %v829
      %v1091 = vadd.f32 %v1090, %v830
      %v1092 = vadd.f32 %v1091, %v831
      %v1093 = vsel %vm409, %v832, 0.0
      %v1094 = vadd.f32 %v1092, %v1093
      %1095 = vadd.xlane.f32.xlu0 %v1094
      %v1096 = vpop.xlane.xlu0 %1095
      %v1097 = vadd.f32 %v833, %v834
      %v1098 = vadd.f32 %v1097, %v835
      %v1099 = vadd.f32 %v1098, %v836
      %v1100 = vadd.f32 %v1099, %v837
      %v1101 = vadd.f32 %v1100, %v838
      %v1102 = vsel %vm409, %v839, 0.0
      %v1103 = vadd.f32 %v1101, %v1102
      %1104 = vadd.xlane.f32.xlu0 %v1103
      %v1105 = vpop.xlane.xlu0 %1104
      %v1106 = vadd.f32 %v840, %v841
      %v1107 = vadd.f32 %v1106, %v842
      %v1108 = vadd.f32 %v1107, %v843
      %v1109 = vadd.f32 %v1108, %v844
      %v1110 = vadd.f32 %v1109, %v845
      %v1111 = vsel %vm409, %v846, 0.0
      %v1112 = vadd.f32 %v1110, %v1111
      %1113 = vadd.xlane.f32.xlu0 %v1112
      %v1114 = vpop.xlane.xlu0 %1113
      %v1115 = vadd.f32 %v847, %v848
      %v1116 = vadd.f32 %v1115, %v849
      %v1117 = vadd.f32 %v1116, %v850
      %v1118 = vadd.f32 %v1117, %v851
      %v1119 = vadd.f32 %v1118, %v852
      %v1120 = vsel %vm409, %v853, 0.0
      %v1121 = vadd.f32 %v1119, %v1120
      %1122 = vadd.xlane.f32.xlu0 %v1121
      %v1123 = vpop.xlane.xlu0 %1122
      %v1124 = vadd.f32 %v854, %v855
      %v1125 = vadd.f32 %v1124, %v856
      %v1126 = vadd.f32 %v1125, %v857
      %v1127 = vadd.f32 %v1126, %v858
      %v1128 = vadd.f32 %v1127, %v859
      %v1129 = vsel %vm409, %v860, 0.0
      %v1130 = vadd.f32 %v1128, %v1129
      %1131 = vadd.xlane.f32.xlu0 %v1130
      %v1132 = vpop.xlane.xlu0 %1131
      %v1133 = vadd.f32 %v861, %v862
      %v1134 = vadd.f32 %v1133, %v863
      %v1135 = vadd.f32 %v1134, %v864
      %v1136 = vadd.f32 %v1135, %v865
      %v1137 = vadd.f32 %v1136, %v866
      %v1138 = vsel %vm409, %v867, 0.0
      %v1139 = vadd.f32 %v1137, %v1138
      %1140 = vadd.xlane.f32.xlu0 %v1139
      %v1141 = vpop.xlane.xlu0 %1140
      %v1142 = vadd.f32 %v868, %v869
      %v1143 = vadd.f32 %v1142, %v870
      %v1144 = vadd.f32 %v1143, %v871
      %v1145 = vadd.f32 %v1144, %v872
      %v1146 = vadd.f32 %v1145, %v873
      %v1147 = vsel %vm409, %v874, 0.0
      %v1148 = vadd.f32 %v1146, %v1147
      %1149 = vadd.xlane.f32.xlu0 %v1148
      %v1150 = vpop.xlane.xlu0 %1149
      %v1151 = vadd.f32 %v875, %v876
      %v1152 = vadd.f32 %v1151, %v877
      %v1153 = vadd.f32 %v1152, %v878
      %v1154 = vadd.f32 %v1153, %v879
      %v1155 = vadd.f32 %v1154, %v880
      %v1156 = vsel %vm409, %v881, 0.0
      %v1157 = vadd.f32 %v1155, %v1156
      %1158 = vadd.xlane.f32.xlu0 %v1157
      %v1159 = vpop.xlane.xlu0 %1158
      %v1160 = vadd.f32 %v882, %v883
      %v1161 = vadd.f32 %v1160, %v884
      %v1162 = vadd.f32 %v1161, %v885
      %v1163 = vadd.f32 %v1162, %v886
      %v1164 = vadd.f32 %v1163, %v887
      %v1165 = vsel %vm409, %v888, 0.0
      %v1166 = vadd.f32 %v1164, %v1165
      %1167 = vadd.xlane.f32.xlu0 %v1166
      %v1168 = vpop.xlane.xlu0 %1167
      %v1169 = vadd.f32 %v889, %v890
      %v1170 = vadd.f32 %v1169, %v891
      %v1171 = vadd.f32 %v1170, %v892
      %v1172 = vadd.f32 %v1171, %v893
      %v1173 = vadd.f32 %v1172, %v894
      %v1174 = vsel %vm409, %v895, 0.0
      %v1175 = vadd.f32 %v1173, %v1174
      %1176 = vadd.xlane.f32.xlu0 %v1175
      %v1177 = vpop.xlane.xlu0 %1176
      %v1178 = vadd.f32 %v896, %v897
      %v1179 = vadd.f32 %v1178, %v898
      %v1180 = vadd.f32 %v1179, %v899
      %v1181 = vadd.f32 %v1180, %v900
      %v1182 = vadd.f32 %v1181, %v901
      %v1183 = vsel %vm409, %v902, 0.0
      %v1184 = vadd.f32 %v1182, %v1183
      %1185 = vadd.xlane.f32.xlu0 %v1184
      %v1186 = vpop.xlane.xlu0 %1185
      %v1187 = vadd.f32 %v903, %v904
      %v1188 = vadd.f32 %v1187, %v905
      %v1189 = vadd.f32 %v1188, %v906
      %v1190 = vadd.f32 %v1189, %v907
      %v1191 = vadd.f32 %v1190, %v908
      %v1192 = vsel %vm409, %v909, 0.0
      %v1193 = vadd.f32 %v1191, %v1192
      %1194 = vadd.xlane.f32.xlu0 %v1193
      %v1195 = vpop.xlane.xlu0 %1194
      %v1196 = vadd.f32 %v910, %v911
      %v1197 = vadd.f32 %v1196, %v912
      %v1198 = vadd.f32 %v1197, %v913
      %v1199 = vadd.f32 %v1198, %v914
      %v1200 = vadd.f32 %v1199, %v915
      %v1201 = vsel %vm409, %v916, 0.0
      %v1202 = vadd.f32 %v1200, %v1201
      %1203 = vadd.xlane.f32.xlu0 %v1202
      %v1204 = vpop.xlane.xlu0 %1203
      %v1205 = vmul.f32 %v413, 0.0012755102
      %v1206 = vmul.f32 %v422, 0.0012755102
      %v1207 = vmul.f32 %v431, 0.0012755102
      %v1208 = vmul.f32 %v440, 0.0012755102
      %v1209 = vmul.f32 %v449, 0.0012755102
      %v1210 = vmul.f32 %v458, 0.0012755102
      %v1211 = vmul.f32 %v467, 0.0012755102
      %v1212 = vmul.f32 %v476, 0.0012755102
      %v1213 = vmul.f32 %v485, 0.0012755102
      %v1214 = vmul.f32 %v494, 0.0012755102
      %v1215 = vmul.f32 %v503, 0.0012755102
      %v1216 = vmul.f32 %v512, 0.0012755102
      %v1217 = vmul.f32 %v521, 0.0012755102
      %v1218 = vmul.f32 %v530, 0.0012755102
      %v1219 = vmul.f32 %v539, 0.0012755102
      %v1220 = vmul.f32 %v548, 0.0012755102
      %v1221 = vmul.f32 %v557, 0.0012755102
      %v1222 = vmul.f32 %v566, 0.0012755102
      %v1223 = vmul.f32 %v575, 0.0012755102
      %v1224 = vmul.f32 %v584, 0.0012755102
      %v1225 = vmul.f32 %v593, 0.0012755102
      %v1226 = vmul.f32 %v602, 0.0012755102
      %v1227 = vmul.f32 %v611, 0.0012755102
      %v1228 = vmul.f32 %v620, 0.0012755102
      %v1229 = vmul.f32 %v629, 0.0012755102
      %v1230 = vmul.f32 %v638, 0.0012755102
      %v1231 = vmul.f32 %v647, 0.0012755102
      %v1232 = vmul.f32 %v656, 0.0012755102
      %v1233 = vmul.f32 %v665, 0.0012755102
      %v1234 = vmul.f32 %v674, 0.0012755102
      %v1235 = vmul.f32 %v683, 0.0012755102
      %v1236 = vmul.f32 %v692, 0.0012755102
      %v1237 = vmul.f32 %v925, 0.0012755102
      %v1238 = vmul.f32 %v934, 0.0012755102
      %v1239 = vmul.f32 %v943, 0.0012755102
      %v1240 = vmul.f32 %v952, 0.0012755102
      %v1241 = vmul.f32 %v961, 0.0012755102
      %v1242 = vmul.f32 %v970, 0.0012755102
      %v1243 = vmul.f32 %v979, 0.0012755102
      %v1244 = vmul.f32 %v988, 0.0012755102
      %v1245 = vmul.f32 %v997, 0.0012755102
      %v1246 = vmul.f32 %v1006, 0.0012755102
      %v1247 = vmul.f32 %v1015, 0.0012755102
      %v1248 = vmul.f32 %v1024, 0.0012755102
      %v1249 = vmul.f32 %v1033, 0.0012755102
      %v1250 = vmul.f32 %v1042, 0.0012755102
      %v1251 = vmul.f32 %v1051, 0.0012755102
      %v1252 = vmul.f32 %v1060, 0.0012755102
      %v1253 = vmul.f32 %v1069, 0.0012755102
      %v1254 = vmul.f32 %v1078, 0.0012755102
      %v1255 = vmul.f32 %v1087, 0.0012755102
      %v1256 = vmul.f32 %v1096, 0.0012755102
      %v1257 = vmul.f32 %v1105, 0.0012755102
      %v1258 = vmul.f32 %v1114, 0.0012755102
      %v1259 = vmul.f32 %v1123, 0.0012755102
      %v1260 = vmul.f32 %v1132, 0.0012755102
      %v1261 = vmul.f32 %v1141, 0.0012755102
      %v1262 = vmul.f32 %v1150, 0.0012755102
      %v1263 = vmul.f32 %v1159, 0.0012755102
      %v1264 = vmul.f32 %v1168, 0.0012755102
      %v1265 = vmul.f32 %v1177, 0.0012755102
      %v1266 = vmul.f32 %v1186, 0.0012755102
      %v1267 = vmul.f32 %v1195, 0.0012755102
      %v1268 = vmul.f32 %v1204, 0.0012755102
      %v1269 = vmul.f32 %v1205, %v1205
      %v1270 = vmul.f32 %v1206, %v1206
      %v1271 = vmul.f32 %v1207, %v1207
      %v1272 = vmul.f32 %v1208, %v1208
      %v1273 = vmul.f32 %v1209, %v1209
      %v1274 = vmul.f32 %v1210, %v1210
      %v1275 = vmul.f32 %v1211, %v1211
      %v1276 = vmul.f32 %v1212, %v1212
      %v1277 = vmul.f32 %v1213, %v1213
      %v1278 = vmul.f32 %v1214, %v1214
      %v1279 = vmul.f32 %v1215, %v1215
      %v1280 = vmul.f32 %v1216, %v1216
      %v1281 = vmul.f32 %v1217, %v1217
      %v1282 = vmul.f32 %v1218, %v1218
      %v1283 = vmul.f32 %v1219, %v1219
      %v1284 = vmul.f32 %v1220, %v1220
      %v1285 = vmul.f32 %v1221, %v1221
      %v1286 = vmul.f32 %v1222, %v1222
      %v1287 = vmul.f32 %v1223, %v1223
      %v1288 = vmul.f32 %v1224, %v1224
      %v1289 = vmul.f32 %v1225, %v1225
      %v1290 = vmul.f32 %v1226, %v1226
      %v1291 = vmul.f32 %v1227, %v1227
      %v1292 = vmul.f32 %v1228, %v1228
      %v1293 = vmul.f32 %v1229, %v1229
      %v1294 = vmul.f32 %v1230, %v1230
      %v1295 = vmul.f32 %v1231, %v1231
      %v1296 = vmul.f32 %v1232, %v1232
      %v1297 = vmul.f32 %v1233, %v1233
      %v1298 = vmul.f32 %v1234, %v1234
      %v1299 = vmul.f32 %v1235, %v1235
      %v1300 = vmul.f32 %v1236, %v1236
      %v1301 = vsub.f32 %v1237, %v1269
      %v1302 = vsub.f32 %v1238, %v1270
      %v1303 = vsub.f32 %v1239, %v1271
      %v1304 = vsub.f32 %v1240, %v1272
      %v1305 = vsub.f32 %v1241, %v1273
      %v1306 = vsub.f32 %v1242, %v1274
      %v1307 = vsub.f32 %v1243, %v1275
      %v1308 = vsub.f32 %v1244, %v1276
      %v1309 = vsub.f32 %v1245, %v1277
      %v1310 = vsub.f32 %v1246, %v1278
      %v1311 = vsub.f32 %v1247, %v1279
      %v1312 = vsub.f32 %v1248, %v1280
      %v1313 = vsub.f32 %v1249, %v1281
      %v1314 = vsub.f32 %v1250, %v1282
      %v1315 = vsub.f32 %v1251, %v1283
      %v1316 = vsub.f32 %v1252, %v1284
      %v1317 = vsub.f32 %v1253, %v1285
      %v1318 = vsub.f32 %v1254, %v1286
      %v1319 = vsub.f32 %v1255, %v1287
      %v1320 = vsub.f32 %v1256, %v1288
      %v1321 = vsub.f32 %v1257, %v1289
      %v1322 = vsub.f32 %v1258, %v1290
      %v1323 = vsub.f32 %v1259, %v1291
      %v1324 = vsub.f32 %v1260, %v1292
      %v1325 = vsub.f32 %v1261, %v1293
      %v1326 = vsub.f32 %v1262, %v1294
      %v1327 = vsub.f32 %v1263, %v1295
      %v1328 = vsub.f32 %v1264, %v1296
      %v1329 = vsub.f32 %v1265, %v1297
      %v1330 = vsub.f32 %v1266, %v1298
      %v1331 = vsub.f32 %v1267, %v1299
      %v1332 = vsub.f32 %v1268, %v1300
      %v1333 = vmax.f32 %v1301, 0.0
      %v1334 = vmax.f32 %v1302, 0.0
      %v1335 = vmax.f32 %v1303, 0.0
      %v1336 = vmax.f32 %v1304, 0.0
      %v1337 = vmax.f32 %v1305, 0.0
      %v1338 = vmax.f32 %v1306, 0.0
      %v1339 = vmax.f32 %v1307, 0.0
      %v1340 = vmax.f32 %v1308, 0.0
      %v1341 = vmax.f32 %v1309, 0.0
      %v1342 = vmax.f32 %v1310, 0.0
      %v1343 = vmax.f32 %v1311, 0.0
      %v1344 = vmax.f32 %v1312, 0.0
      %v1345 = vmax.f32 %v1313, 0.0
      %v1346 = vmax.f32 %v1314, 0.0
      %v1347 = vmax.f32 %v1315, 0.0
      %v1348 = vmax.f32 %v1316, 0.0
      %v1349 = vmax.f32 %v1317, 0.0
      %v1350 = vmax.f32 %v1318, 0.0
      %v1351 = vmax.f32 %v1319, 0.0
      %v1352 = vmax.f32 %v1320, 0.0
      %v1353 = vmax.f32 %v1321, 0.0
      %v1354 = vmax.f32 %v1322, 0.0
      %v1355 = vmax.f32 %v1323, 0.0
      %v1356 = vmax.f32 %v1324, 0.0
      %v1357 = vmax.f32 %v1325, 0.0
      %v1358 = vmax.f32 %v1326, 0.0
      %v1359 = vmax.f32 %v1327, 0.0
      %v1360 = vmax.f32 %v1328, 0.0
      %v1361 = vmax.f32 %v1329, 0.0
      %v1362 = vmax.f32 %v1330, 0.0
      %v1363 = vmax.f32 %v1331, 0.0
      %v1364 = vmax.f32 %v1332, 0.0
      %v1365 = vadd.f32 %v1333, 1e-05
      %v1366 = vadd.f32 %v1334, 1e-05
      %v1367 = vadd.f32 %v1335, 1e-05
      %v1368 = vadd.f32 %v1336, 1e-05
      %v1369 = vadd.f32 %v1337, 1e-05
      %v1370 = vadd.f32 %v1338, 1e-05
      %v1371 = vadd.f32 %v1339, 1e-05
      %v1372 = vadd.f32 %v1340, 1e-05
      %v1373 = vadd.f32 %v1341, 1e-05
      %v1374 = vadd.f32 %v1342, 1e-05
      %v1375 = vadd.f32 %v1343, 1e-05
      %v1376 = vadd.f32 %v1344, 1e-05
      %v1377 = vadd.f32 %v1345, 1e-05
      %v1378 = vadd.f32 %v1346, 1e-05
      %v1379 = vadd.f32 %v1347, 1e-05
      %v1380 = vadd.f32 %v1348, 1e-05
      %v1381 = vadd.f32 %v1349, 1e-05
      %v1382 = vadd.f32 %v1350, 1e-05
      %v1383 = vadd.f32 %v1351, 1e-05
      %v1384 = vadd.f32 %v1352, 1e-05
      %v1385 = vadd.f32 %v1353, 1e-05
      %v1386 = vadd.f32 %v1354, 1e-05
      %v1387 = vadd.f32 %v1355, 1e-05
      %v1388 = vadd.f32 %v1356, 1e-05
      %v1389 = vadd.f32 %v1357, 1e-05
      %v1390 = vadd.f32 %v1358, 1e-05
      %v1391 = vadd.f32 %v1359, 1e-05
      %v1392 = vadd.f32 %v1360, 1e-05
      %v1393 = vadd.f32 %v1361, 1e-05
      %v1394 = vadd.f32 %v1362, 1e-05
      %v1395 = vadd.f32 %v1363, 1e-05
      %v1396 = vadd.f32 %v1364, 1e-05
      %v1397 = vrsqrt.pop %v1365
      %v1398 = vrsqrt.pop %v1366
      %v1399 = vrsqrt.pop %v1367
      %v1400 = vrsqrt.pop %v1368
      %v1401 = vrsqrt.pop %v1369
      %v1402 = vrsqrt.pop %v1370
      %v1403 = vrsqrt.pop %v1371
      %v1404 = vrsqrt.pop %v1372
      %v1405 = vrsqrt.pop %v1373
      %v1406 = vrsqrt.pop %v1374
      %v1407 = vrsqrt.pop %v1375
      %v1408 = vrsqrt.pop %v1376
      %v1409 = vrsqrt.pop %v1377
      %v1410 = vrsqrt.pop %v1378
      %v1411 = vrsqrt.pop %v1379
      %v1412 = vrsqrt.pop %v1380
      %v1413 = vrsqrt.pop %v1381
      %v1414 = vrsqrt.pop %v1382
      %v1415 = vrsqrt.pop %v1383
      %v1416 = vrsqrt.pop %v1384
      %v1417 = vrsqrt.pop %v1385
      %v1418 = vrsqrt.pop %v1386
      %v1419 = vrsqrt.pop %v1387
      %v1420 = vrsqrt.pop %v1388
      %v1421 = vrsqrt.pop %v1389
      %v1422 = vrsqrt.pop %v1390
      %v1423 = vrsqrt.pop %v1391
      %v1424 = vrsqrt.pop %v1392
      %v1425 = vrsqrt.pop %v1393
      %v1426 = vrsqrt.pop %v1394
      %v1427 = vrsqrt.pop %v1395
      %v1428 = vrsqrt.pop %v1396
      %s1429 = scalar_lea.vmem %s1, %s179
      %v1430 = vld [vmem:[%s1429] sm:$0xff]
      %v1431 = vld [vmem:[%s1429 + $0x8] sm:$0xff]
      %v1432 = vld [vmem:[%s1429 + $0x10] sm:$0xff]
      %v1433 = vld [vmem:[%s1429 + $0x18] sm:$0xff]
      %v1434 = vld [vmem:[%s1429 + $0x20] sm:$0xff]
      %v1435 = vld [vmem:[%s1429 + $0x28] sm:$0xff]
      %v1436 = vld [vmem:[%s1429 + $0x30] sm:$0xff]
      %v1437 = vld [vmem:[%s1429 + $0x38] sm:$0xff]
      %v1438 = vld [vmem:[%s1429 + $0x40] sm:$0xff]
      %v1439 = vld [vmem:[%s1429 + $0x48] sm:$0xff]
      %v1440 = vld [vmem:[%s1429 + $0x50] sm:$0xff]
      %v1441 = vld [vmem:[%s1429 + $0x58] sm:$0xff]
      %v1442 = vld [vmem:[%s1429 + $0x60] sm:$0xff]
      %v1443 = vld [vmem:[%s1429 + $0x68] sm:$0xff]
      %v1444 = vld [vmem:[%s1429 + $0x70] sm:$0xff]
      %v1445 = vld [vmem:[%s1429 + $0x78] sm:$0xff]
      %v1446 = vld [vmem:[%s1429 + $0x80] sm:$0xff]
      %v1447 = vld [vmem:[%s1429 + $0x88] sm:$0xff]
      %v1448 = vld [vmem:[%s1429 + $0x90] sm:$0xff]
      %v1449 = vld [vmem:[%s1429 + $0x98] sm:$0xff]
      %v1450 = vld [vmem:[%s1429 + $0xa0] sm:$0xff]
      %v1451 = vld [vmem:[%s1429 + $0xa8] sm:$0xff]
      %v1452 = vld [vmem:[%s1429 + $0xb0] sm:$0xff]
      %v1453 = vld [vmem:[%s1429 + $0xb8] sm:$0xff]
      %v1454 = vld [vmem:[%s1429 + $0xc0] sm:$0xff]
      %v1455 = vld [vmem:[%s1429 + $0xc8] sm:$0xff]
      %v1456 = vld [vmem:[%s1429 + $0xd0] sm:$0xff]
      %v1457 = vld [vmem:[%s1429 + $0xd8] sm:$0xff]
      %v1458 = vld [vmem:[%s1429 + $0xe0] sm:$0xff]
      %v1459 = vld [vmem:[%s1429 + $0xe8] sm:$0xff]
      %v1460 = vld [vmem:[%s1429 + $0xf0] sm:$0xff]
      %v1461 = vld [vmem:[%s1429 + $0xf8] sm:$0xff]
      %v1462 = vmul.f32 %v1430, %v1397
      %v1463 = vmul.f32 %v1431, %v1398
      %v1464 = vmul.f32 %v1432, %v1399
      %v1465 = vmul.f32 %v1433, %v1400
      %v1466 = vmul.f32 %v1434, %v1401
      %v1467 = vmul.f32 %v1435, %v1402
      %v1468 = vmul.f32 %v1436, %v1403
      %v1469 = vmul.f32 %v1437, %v1404
      %v1470 = vmul.f32 %v1438, %v1405
      %v1471 = vmul.f32 %v1439, %v1406
      %v1472 = vmul.f32 %v1440, %v1407
      %v1473 = vmul.f32 %v1441, %v1408
      %v1474 = vmul.f32 %v1442, %v1409
      %v1475 = vmul.f32 %v1443, %v1410
      %v1476 = vmul.f32 %v1444, %v1411
      %v1477 = vmul.f32 %v1445, %v1412
      %v1478 = vmul.f32 %v1446, %v1413
      %v1479 = vmul.f32 %v1447, %v1414
      %v1480 = vmul.f32 %v1448, %v1415
      %v1481 = vmul.f32 %v1449, %v1416
      %v1482 = vmul.f32 %v1450, %v1417
      %v1483 = vmul.f32 %v1451, %v1418
      %v1484 = vmul.f32 %v1452, %v1419
      %v1485 = vmul.f32 %v1453, %v1420
      %v1486 = vmul.f32 %v1454, %v1421
      %v1487 = vmul.f32 %v1455, %v1422
      %v1488 = vmul.f32 %v1456, %v1423
      %v1489 = vmul.f32 %v1457, %v1424
      %v1490 = vmul.f32 %v1458, %v1425
      %v1491 = vmul.f32 %v1459, %v1426
      %v1492 = vmul.f32 %v1460, %v1427
      %v1493 = vmul.f32 %v1461, %v1428
      %s1494 = scalar_lea.vmem %s2, %s179
      %v1495 = vld [vmem:[%s1494] sm:$0xff]
      %v1496 = vld [vmem:[%s1494 + $0x8] sm:$0xff]
      %v1497 = vld [vmem:[%s1494 + $0x10] sm:$0xff]
      %v1498 = vld [vmem:[%s1494 + $0x18] sm:$0xff]
      %v1499 = vld [vmem:[%s1494 + $0x20] sm:$0xff]
      %v1500 = vld [vmem:[%s1494 + $0x28] sm:$0xff]
      %v1501 = vld [vmem:[%s1494 + $0x30] sm:$0xff]
      %v1502 = vld [vmem:[%s1494 + $0x38] sm:$0xff]
      %v1503 = vld [vmem:[%s1494 + $0x40] sm:$0xff]
      %v1504 = vld [vmem:[%s1494 + $0x48] sm:$0xff]
      %v1505 = vld [vmem:[%s1494 + $0x50] sm:$0xff]
      %v1506 = vld [vmem:[%s1494 + $0x58] sm:$0xff]
      %v1507 = vld [vmem:[%s1494 + $0x60] sm:$0xff]
      %v1508 = vld [vmem:[%s1494 + $0x68] sm:$0xff]
      %v1509 = vld [vmem:[%s1494 + $0x70] sm:$0xff]
      %v1510 = vld [vmem:[%s1494 + $0x78] sm:$0xff]
      %v1511 = vld [vmem:[%s1494 + $0x80] sm:$0xff]
      %v1512 = vld [vmem:[%s1494 + $0x88] sm:$0xff]
      %v1513 = vld [vmem:[%s1494 + $0x90] sm:$0xff]
      %v1514 = vld [vmem:[%s1494 + $0x98] sm:$0xff]
      %v1515 = vld [vmem:[%s1494 + $0xa0] sm:$0xff]
      %v1516 = vld [vmem:[%s1494 + $0xa8] sm:$0xff]
      %v1517 = vld [vmem:[%s1494 + $0xb0] sm:$0xff]
      %v1518 = vld [vmem:[%s1494 + $0xb8] sm:$0xff]
      %v1519 = vld [vmem:[%s1494 + $0xc0] sm:$0xff]
      %v1520 = vld [vmem:[%s1494 + $0xc8] sm:$0xff]
      %v1521 = vld [vmem:[%s1494 + $0xd0] sm:$0xff]
      %v1522 = vld [vmem:[%s1494 + $0xd8] sm:$0xff]
      %v1523 = vld [vmem:[%s1494 + $0xe0] sm:$0xff]
      %v1524 = vld [vmem:[%s1494 + $0xe8] sm:$0xff]
      %v1525 = vld [vmem:[%s1494 + $0xf0] sm:$0xff]
      %v1526 = vld [vmem:[%s1494 + $0xf8] sm:$0xff]
      %v1527 = vmul.f32 %v1205, %v1462
      %v1528 = vmul.f32 %v1206, %v1463
      %v1529 = vmul.f32 %v1207, %v1464
      %v1530 = vmul.f32 %v1208, %v1465
      %v1531 = vmul.f32 %v1209, %v1466
      %v1532 = vmul.f32 %v1210, %v1467
      %v1533 = vmul.f32 %v1211, %v1468
      %v1534 = vmul.f32 %v1212, %v1469
      %v1535 = vmul.f32 %v1213, %v1470
      %v1536 = vmul.f32 %v1214, %v1471
      %v1537 = vmul.f32 %v1215, %v1472
      %v1538 = vmul.f32 %v1216, %v1473
      %v1539 = vmul.f32 %v1217, %v1474
      %v1540 = vmul.f32 %v1218, %v1475
      %v1541 = vmul.f32 %v1219, %v1476
      %v1542 = vmul.f32 %v1220, %v1477
      %v1543 = vmul.f32 %v1221, %v1478
      %v1544 = vmul.f32 %v1222, %v1479
      %v1545 = vmul.f32 %v1223, %v1480
      %v1546 = vmul.f32 %v1224, %v1481
      %v1547 = vmul.f32 %v1225, %v1482
      %v1548 = vmul.f32 %v1226, %v1483
      %v1549 = vmul.f32 %v1227, %v1484
      %v1550 = vmul.f32 %v1228, %v1485
      %v1551 = vmul.f32 %v1229, %v1486
      %v1552 = vmul.f32 %v1230, %v1487
      %v1553 = vmul.f32 %v1231, %v1488
      %v1554 = vmul.f32 %v1232, %v1489
      %v1555 = vmul.f32 %v1233, %v1490
      %v1556 = vmul.f32 %v1234, %v1491
      %v1557 = vmul.f32 %v1235, %v1492
      %v1558 = vmul.f32 %v1236, %v1493
      %v1559 = vsub.f32 %v1495, %v1527
      %v1560 = vsub.f32 %v1496, %v1528
      %v1561 = vsub.f32 %v1497, %v1529
      %v1562 = vsub.f32 %v1498, %v1530
      %v1563 = vsub.f32 %v1499, %v1531
      %v1564 = vsub.f32 %v1500, %v1532
      %v1565 = vsub.f32 %v1501, %v1533
      %v1566 = vsub.f32 %v1502, %v1534
      %v1567 = vsub.f32 %v1503, %v1535
      %v1568 = vsub.f32 %v1504, %v1536
      %v1569 = vsub.f32 %v1505, %v1537
      %v1570 = vsub.f32 %v1506, %v1538
      %v1571 = vsub.f32 %v1507, %v1539
      %v1572 = vsub.f32 %v1508, %v1540
      %v1573 = vsub.f32 %v1509, %v1541
      %v1574 = vsub.f32 %v1510, %v1542
      %v1575 = vsub.f32 %v1511, %v1543
      %v1576 = vsub.f32 %v1512, %v1544
      %v1577 = vsub.f32 %v1513, %v1545
      %v1578 = vsub.f32 %v1514, %v1546
      %v1579 = vsub.f32 %v1515, %v1547
      %v1580 = vsub.f32 %v1516, %v1548
      %v1581 = vsub.f32 %v1517, %v1549
      %v1582 = vsub.f32 %v1518, %v1550
      %v1583 = vsub.f32 %v1519, %v1551
      %v1584 = vsub.f32 %v1520, %v1552
      %v1585 = vsub.f32 %v1521, %v1553
      %v1586 = vsub.f32 %v1522, %v1554
      %v1587 = vsub.f32 %v1523, %v1555
      %v1588 = vsub.f32 %v1524, %v1556
      %v1589 = vsub.f32 %v1525, %v1557
      %v1590 = vsub.f32 %v1526, %v1558
      %1592 = vset.pattern.permute.xlu0 0
      %1593 = vperm.xlu0 %1592, %v1462
      %v1594 = vpop.permute.xlu0 %1593
      %1597 = vset.pattern.permute.xlu0 0
      %1598 = vperm.xlu0 %1597, %v1463
      %v1599 = vpop.permute.xlu0 %1598
      %1602 = vset.pattern.permute.xlu0 0
      %1603 = vperm.xlu0 %1602, %v1464
      %v1604 = vpop.permute.xlu0 %1603
      %1607 = vset.pattern.permute.xlu0 0
      %1608 = vperm.xlu0 %1607, %v1465
      %v1609 = vpop.permute.xlu0 %1608
      %1612 = vset.pattern.permute.xlu0 0
      %1613 = vperm.xlu0 %1612, %v1466
      %v1614 = vpop.permute.xlu0 %1613
      %1617 = vset.pattern.permute.xlu0 0
      %1618 = vperm.xlu0 %1617, %v1467
      %v1619 = vpop.permute.xlu0 %1618
      %1622 = vset.pattern.permute.xlu0 0
      %1623 = vperm.xlu0 %1622, %v1468
      %v1624 = vpop.permute.xlu0 %1623
      %1627 = vset.pattern.permute.xlu0 0
      %1628 = vperm.xlu0 %1627, %v1469
      %v1629 = vpop.permute.xlu0 %1628
      %1632 = vset.pattern.permute.xlu0 0
      %1633 = vperm.xlu0 %1632, %v1470
      %v1634 = vpop.permute.xlu0 %1633
      %1637 = vset.pattern.permute.xlu0 0
      %1638 = vperm.xlu0 %1637, %v1471
      %v1639 = vpop.permute.xlu0 %1638
      %1642 = vset.pattern.permute.xlu0 0
      %1643 = vperm.xlu0 %1642, %v1472
      %v1644 = vpop.permute.xlu0 %1643
      %1647 = vset.pattern.permute.xlu0 0
      %1648 = vperm.xlu0 %1647, %v1473
      %v1649 = vpop.permute.xlu0 %1648
      %1652 = vset.pattern.permute.xlu0 0
      %1653 = vperm.xlu0 %1652, %v1474
      %v1654 = vpop.permute.xlu0 %1653
      %1657 = vset.pattern.permute.xlu0 0
      %1658 = vperm.xlu0 %1657, %v1475
      %v1659 = vpop.permute.xlu0 %1658
      %1662 = vset.pattern.permute.xlu0 0
      %1663 = vperm.xlu0 %1662, %v1476
      %v1664 = vpop.permute.xlu0 %1663
      %1667 = vset.pattern.permute.xlu0 0
      %1668 = vperm.xlu0 %1667, %v1477
      %v1669 = vpop.permute.xlu0 %1668
      %1672 = vset.pattern.permute.xlu0 0
      %1673 = vperm.xlu0 %1672, %v1478
      %v1674 = vpop.permute.xlu0 %1673
      %1677 = vset.pattern.permute.xlu0 0
      %1678 = vperm.xlu0 %1677, %v1479
      %v1679 = vpop.permute.xlu0 %1678
      %1682 = vset.pattern.permute.xlu0 0
      %1683 = vperm.xlu0 %1682, %v1480
      %v1684 = vpop.permute.xlu0 %1683
      %1687 = vset.pattern.permute.xlu0 0
      %1688 = vperm.xlu0 %1687, %v1481
      %v1689 = vpop.permute.xlu0 %1688
      %1692 = vset.pattern.permute.xlu0 0
      %1693 = vperm.xlu0 %1692, %v1482
      %v1694 = vpop.permute.xlu0 %1693
      %1697 = vset.pattern.permute.xlu0 0
      %1698 = vperm.xlu0 %1697, %v1483
      %v1699 = vpop.permute.xlu0 %1698
      %1702 = vset.pattern.permute.xlu0 0
      %1703 = vperm.xlu0 %1702, %v1484
      %v1704 = vpop.permute.xlu0 %1703
      %1707 = vset.pattern.permute.xlu0 0
      %1708 = vperm.xlu0 %1707, %v1485
      %v1709 = vpop.permute.xlu0 %1708
      %1712 = vset.pattern.permute.xlu0 0
      %1713 = vperm.xlu0 %1712, %v1486
      %v1714 = vpop.permute.xlu0 %1713
      %1717 = vset.pattern.permute.xlu0 0
      %1718 = vperm.xlu0 %1717, %v1487
      %v1719 = vpop.permute.xlu0 %1718
      %1722 = vset.pattern.permute.xlu0 0
      %1723 = vperm.xlu0 %1722, %v1488
      %v1724 = vpop.permute.xlu0 %1723
      %1727 = vset.pattern.permute.xlu0 0
      %1728 = vperm.xlu0 %1727, %v1489
      %v1729 = vpop.permute.xlu0 %1728
      %1732 = vset.pattern.permute.xlu0 0
      %1733 = vperm.xlu0 %1732, %v1490
      %v1734 = vpop.permute.xlu0 %1733
      %1737 = vset.pattern.permute.xlu0 0
      %1738 = vperm.xlu0 %1737, %v1491
      %v1739 = vpop.permute.xlu0 %1738
      %1742 = vset.pattern.permute.xlu0 0
      %1743 = vperm.xlu0 %1742, %v1492
      %v1744 = vpop.permute.xlu0 %1743
      %1747 = vset.pattern.permute.xlu0 0
      %1748 = vperm.xlu0 %1747, %v1493
      %v1749 = vpop.permute.xlu0 %1748
      %v1751 = vmul.f32 %v180, %v1594
      %v1752 = vmul.f32 %v181, %v1594
      %v1753 = vmul.f32 %v182, %v1594
      %v1754 = vmul.f32 %v183, %v1594
      %v1755 = vmul.f32 %v184, %v1594
      %v1756 = vmul.f32 %v185, %v1594
      %v1757 = vmul.f32 %v186, %v1594
      %v1758 = vmul.f32 %v187, %v1599
      %v1759 = vmul.f32 %v188, %v1599
      %v1760 = vmul.f32 %v189, %v1599
      %v1761 = vmul.f32 %v190, %v1599
      %v1762 = vmul.f32 %v191, %v1599
      %v1763 = vmul.f32 %v192, %v1599
      %v1764 = vmul.f32 %v193, %v1599
      %v1765 = vmul.f32 %v194, %v1604
      %v1766 = vmul.f32 %v195, %v1604
      %v1767 = vmul.f32 %v196, %v1604
      %v1768 = vmul.f32 %v197, %v1604
      %v1769 = vmul.f32 %v198, %v1604
      %v1770 = vmul.f32 %v199, %v1604
      %v1771 = vmul.f32 %v200, %v1604
      %v1772 = vmul.f32 %v201, %v1609
      %v1773 = vmul.f32 %v202, %v1609
      %v1774 = vmul.f32 %v203, %v1609
      %v1775 = vmul.f32 %v204, %v1609
      %v1776 = vmul.f32 %v205, %v1609
      %v1777 = vmul.f32 %v206, %v1609
      %v1778 = vmul.f32 %v207, %v1609
      %v1779 = vmul.f32 %v208, %v1614
      %v1780 = vmul.f32 %v209, %v1614
      %v1781 = vmul.f32 %v210, %v1614
      %v1782 = vmul.f32 %v211, %v1614
      %v1783 = vmul.f32 %v212, %v1614
      %v1784 = vmul.f32 %v213, %v1614
      %v1785 = vmul.f32 %v214, %v1614
      %v1786 = vmul.f32 %v215, %v1619
      %v1787 = vmul.f32 %v216, %v1619
      %v1788 = vmul.f32 %v217, %v1619
      %v1789 = vmul.f32 %v218, %v1619
      %v1790 = vmul.f32 %v219, %v1619
      %v1791 = vmul.f32 %v220, %v1619
      %v1792 = vmul.f32 %v221, %v1619
      %v1793 = vmul.f32 %v222, %v1624
      %v1794 = vmul.f32 %v223, %v1624
      %v1795 = vmul.f32 %v224, %v1624
      %v1796 = vmul.f32 %v225, %v1624
      %v1797 = vmul.f32 %v226, %v1624
      %v1798 = vmul.f32 %v227, %v1624
      %v1799 = vmul.f32 %v228, %v1624
      %v1800 = vmul.f32 %v229, %v1629
      %v1801 = vmul.f32 %v230, %v1629
      %v1802 = vmul.f32 %v231, %v1629
      %v1803 = vmul.f32 %v232, %v1629
      %v1804 = vmul.f32 %v233, %v1629
      %v1805 = vmul.f32 %v234, %v1629
      %v1806 = vmul.f32 %v235, %v1629
      %v1807 = vmul.f32 %v236, %v1634
      %v1808 = vmul.f32 %v237, %v1634
      %v1809 = vmul.f32 %v238, %v1634
      %v1810 = vmul.f32 %v239, %v1634
      %v1811 = vmul.f32 %v240, %v1634
      %v1812 = vmul.f32 %v241, %v1634
      %v1813 = vmul.f32 %v242, %v1634
      %v1814 = vmul.f32 %v243, %v1639
      %v1815 = vmul.f32 %v244, %v1639
      %v1816 = vmul.f32 %v245, %v1639
      %v1817 = vmul.f32 %v246, %v1639
      %v1818 = vmul.f32 %v247, %v1639
      %v1819 = vmul.f32 %v248, %v1639
      %v1820 = vmul.f32 %v249, %v1639
      %v1821 = vmul.f32 %v250, %v1644
      %v1822 = vmul.f32 %v251, %v1644
      %v1823 = vmul.f32 %v252, %v1644
      %v1824 = vmul.f32 %v253, %v1644
      %v1825 = vmul.f32 %v254, %v1644
      %v1826 = vmul.f32 %v255, %v1644
      %v1827 = vmul.f32 %v256, %v1644
      %v1828 = vmul.f32 %v257, %v1649
      %v1829 = vmul.f32 %v258, %v1649
      %v1830 = vmul.f32 %v259, %v1649
      %v1831 = vmul.f32 %v260, %v1649
      %v1832 = vmul.f32 %v261, %v1649
      %v1833 = vmul.f32 %v262, %v1649
      %v1834 = vmul.f32 %v263, %v1649
      %v1835 = vmul.f32 %v264, %v1654
      %v1836 = vmul.f32 %v265, %v1654
      %v1837 = vmul.f32 %v266, %v1654
      %v1838 = vmul.f32 %v267, %v1654
      %v1839 = vmul.f32 %v268, %v1654
      %v1840 = vmul.f32 %v269, %v1654
      %v1841 = vmul.f32 %v270, %v1654
      %v1842 = vmul.f32 %v271, %v1659
      %v1843 = vmul.f32 %v272, %v1659
      %v1844 = vmul.f32 %v273, %v1659
      %v1845 = vmul.f32 %v274, %v1659
      %v1846 = vmul.f32 %v275, %v1659
      %v1847 = vmul.f32 %v276, %v1659
      %v1848 = vmul.f32 %v277, %v1659
      %v1849 = vmul.f32 %v278, %v1664
      %v1850 = vmul.f32 %v279, %v1664
      %v1851 = vmul.f32 %v280, %v1664
      %v1852 = vmul.f32 %v281, %v1664
      %v1853 = vmul.f32 %v282, %v1664
      %v1854 = vmul.f32 %v283, %v1664
      %v1855 = vmul.f32 %v284, %v1664
      %v1856 = vmul.f32 %v285, %v1669
      %v1857 = vmul.f32 %v286, %v1669
      %v1858 = vmul.f32 %v287, %v1669
      %v1859 = vmul.f32 %v288, %v1669
      %v1860 = vmul.f32 %v289, %v1669
      %v1861 = vmul.f32 %v290, %v1669
      %v1862 = vmul.f32 %v291, %v1669
      %v1863 = vmul.f32 %v292, %v1674
      %v1864 = vmul.f32 %v293, %v1674
      %v1865 = vmul.f32 %v294, %v1674
      %v1866 = vmul.f32 %v295, %v1674
      %v1867 = vmul.f32 %v296, %v1674
      %v1868 = vmul.f32 %v297, %v1674
      %v1869 = vmul.f32 %v298, %v1674
      %v1870 = vmul.f32 %v299, %v1679
      %v1871 = vmul.f32 %v300, %v1679
      %v1872 = vmul.f32 %v301, %v1679
      %v1873 = vmul.f32 %v302, %v1679
      %v1874 = vmul.f32 %v303, %v1679
      %v1875 = vmul.f32 %v304, %v1679
      %v1876 = vmul.f32 %v305, %v1679
      %v1877 = vmul.f32 %v306, %v1684
      %v1878 = vmul.f32 %v307, %v1684
      %v1879 = vmul.f32 %v308, %v1684
      %v1880 = vmul.f32 %v309, %v1684
      %v1881 = vmul.f32 %v310, %v1684
      %v1882 = vmul.f32 %v311, %v1684
      %v1883 = vmul.f32 %v312, %v1684
      %v1884 = vmul.f32 %v313, %v1689
      %v1885 = vmul.f32 %v314, %v1689
      %v1886 = vmul.f32 %v315, %v1689
      %v1887 = vmul.f32 %v316, %v1689
      %v1888 = vmul.f32 %v317, %v1689
      %v1889 = vmul.f32 %v318, %v1689
      %v1890 = vmul.f32 %v319, %v1689
      %v1891 = vmul.f32 %v320, %v1694
      %v1892 = vmul.f32 %v321, %v1694
      %v1893 = vmul.f32 %v322, %v1694
      %v1894 = vmul.f32 %v323, %v1694
      %v1895 = vmul.f32 %v324, %v1694
      %v1896 = vmul.f32 %v325, %v1694
      %v1897 = vmul.f32 %v326, %v1694
      %v1898 = vmul.f32 %v327, %v1699
      %v1899 = vmul.f32 %v328, %v1699
      %v1900 = vmul.f32 %v329, %v1699
      %v1901 = vmul.f32 %v330, %v1699
      %v1902 = vmul.f32 %v331, %v1699
      %v1903 = vmul.f32 %v332, %v1699
      %v1904 = vmul.f32 %v333, %v1699
      %v1905 = vmul.f32 %v334, %v1704
      %v1906 = vmul.f32 %v335, %v1704
      %v1907 = vmul.f32 %v336, %v1704
      %v1908 = vmul.f32 %v337, %v1704
      %v1909 = vmul.f32 %v338, %v1704
      %v1910 = vmul.f32 %v339, %v1704
      %v1911 = vmul.f32 %v340, %v1704
      %v1912 = vmul.f32 %v341, %v1709
      %v1913 = vmul.f32 %v342, %v1709
      %v1914 = vmul.f32 %v343, %v1709
      %v1915 = vmul.f32 %v344, %v1709
      %v1916 = vmul.f32 %v345, %v1709
      %v1917 = vmul.f32 %v346, %v1709
      %v1918 = vmul.f32 %v347, %v1709
      %v1919 = vmul.f32 %v348, %v1714
      %v1920 = vmul.f32 %v349, %v1714
      %v1921 = vmul.f32 %v350, %v1714
      %v1922 = vmul.f32 %v351, %v1714
      %v1923 = vmul.f32 %v352, %v1714
      %v1924 = vmul.f32 %v353, %v1714
      %v1925 = vmul.f32 %v354, %v1714
      %v1926 = vmul.f32 %v355, %v1719
      %v1927 = vmul.f32 %v356, %v1719
      %v1928 = vmul.f32 %v357, %v1719
      %v1929 = vmul.f32 %v358, %v1719
      %v1930 = vmul.f32 %v359, %v1719
      %v1931 = vmul.f32 %v360, %v1719
      %v1932 = vmul.f32 %v361, %v1719
      %v1933 = vmul.f32 %v362, %v1724
      %v1934 = vmul.f32 %v363, %v1724
      %v1935 = vmul.f32 %v364, %v1724
      %v1936 = vmul.f32 %v365, %v1724
      %v1937 = vmul.f32 %v366, %v1724
      %v1938 = vmul.f32 %v367, %v1724
      %v1939 = vmul.f32 %v368, %v1724
      %v1940 = vmul.f32 %v369, %v1729
      %v1941 = vmul.f32 %v370, %v1729
      %v1942 = vmul.f32 %v371, %v1729
      %v1943 = vmul.f32 %v372, %v1729
      %v1944 = vmul.f32 %v373, %v1729
      %v1945 = vmul.f32 %v374, %v1729
      %v1946 = vmul.f32 %v375, %v1729
      %v1947 = vmul.f32 %v376, %v1734
      %v1948 = vmul.f32 %v377, %v1734
      %v1949 = vmul.f32 %v378, %v1734
      %v1950 = vmul.f32 %v379, %v1734
      %v1951 = vmul.f32 %v380, %v1734
      %v1952 = vmul.f32 %v381, %v1734
      %v1953 = vmul.f32 %v382, %v1734
      %v1954 = vmul.f32 %v383, %v1739
      %v1955 = vmul.f32 %v384, %v1739
      %v1956 = vmul.f32 %v385, %v1739
      %v1957 = vmul.f32 %v386, %v1739
      %v1958 = vmul.f32 %v387, %v1739
      %v1959 = vmul.f32 %v388, %v1739
      %v1960 = vmul.f32 %v389, %v1739
      %v1961 = vmul.f32 %v390, %v1744
      %v1962 = vmul.f32 %v391, %v1744
      %v1963 = vmul.f32 %v392, %v1744
      %v1964 = vmul.f32 %v393, %v1744
      %v1965 = vmul.f32 %v394, %v1744
      %v1966 = vmul.f32 %v395, %v1744
      %v1967 = vmul.f32 %v396, %v1744
      %v1968 = vmul.f32 %v397, %v1749
      %v1969 = vmul.f32 %v398, %v1749
      %v1970 = vmul.f32 %v399, %v1749
      %v1971 = vmul.f32 %v400, %v1749
      %v1972 = vmul.f32 %v401, %v1749
      %v1973 = vmul.f32 %v402, %v1749
      %v1974 = vmul.f32 %v403, %v1749
      %1976 = vset.pattern.permute.xlu0 0
      %1977 = vperm.xlu0 %1976, %v1559
      %v1978 = vpop.permute.xlu0 %1977
      %1981 = vset.pattern.permute.xlu0 0
      %1982 = vperm.xlu0 %1981, %v1560
      %v1983 = vpop.permute.xlu0 %1982
      %1986 = vset.pattern.permute.xlu0 0
      %1987 = vperm.xlu0 %1986, %v1561
      %v1988 = vpop.permute.xlu0 %1987
      %1991 = vset.pattern.permute.xlu0 0
      %1992 = vperm.xlu0 %1991, %v1562
      %v1993 = vpop.permute.xlu0 %1992
      %1996 = vset.pattern.permute.xlu0 0
      %1997 = vperm.xlu0 %1996, %v1563
      %v1998 = vpop.permute.xlu0 %1997
      %2001 = vset.pattern.permute.xlu0 0
      %2002 = vperm.xlu0 %2001, %v1564
      %v2003 = vpop.permute.xlu0 %2002
      %2006 = vset.pattern.permute.xlu0 0
      %2007 = vperm.xlu0 %2006, %v1565
      %v2008 = vpop.permute.xlu0 %2007
      %2011 = vset.pattern.permute.xlu0 0
      %2012 = vperm.xlu0 %2011, %v1566
      %v2013 = vpop.permute.xlu0 %2012
      %2016 = vset.pattern.permute.xlu0 0
      %2017 = vperm.xlu0 %2016, %v1567
      %v2018 = vpop.permute.xlu0 %2017
      %2021 = vset.pattern.permute.xlu0 0
      %2022 = vperm.xlu0 %2021, %v1568
      %v2023 = vpop.permute.xlu0 %2022
      %2026 = vset.pattern.permute.xlu0 0
      %2027 = vperm.xlu0 %2026, %v1569
      %v2028 = vpop.permute.xlu0 %2027
      %2031 = vset.pattern.permute.xlu0 0
      %2032 = vperm.xlu0 %2031, %v1570
      %v2033 = vpop.permute.xlu0 %2032
      %2036 = vset.pattern.permute.xlu0 0
      %2037 = vperm.xlu0 %2036, %v1571
      %v2038 = vpop.permute.xlu0 %2037
      %2041 = vset.pattern.permute.xlu0 0
      %2042 = vperm.xlu0 %2041, %v1572
      %v2043 = vpop.permute.xlu0 %2042
      %2046 = vset.pattern.permute.xlu0 0
      %2047 = vperm.xlu0 %2046, %v1573
      %v2048 = vpop.permute.xlu0 %2047
      %2051 = vset.pattern.permute.xlu0 0
      %2052 = vperm.xlu0 %2051, %v1574
      %v2053 = vpop.permute.xlu0 %2052
      %2056 = vset.pattern.permute.xlu0 0
      %2057 = vperm.xlu0 %2056, %v1575
      %v2058 = vpop.permute.xlu0 %2057
      %2061 = vset.pattern.permute.xlu0 0
      %2062 = vperm.xlu0 %2061, %v1576
      %v2063 = vpop.permute.xlu0 %2062
      %2066 = vset.pattern.permute.xlu0 0
      %2067 = vperm.xlu0 %2066, %v1577
      %v2068 = vpop.permute.xlu0 %2067
      %2071 = vset.pattern.permute.xlu0 0
      %2072 = vperm.xlu0 %2071, %v1578
      %v2073 = vpop.permute.xlu0 %2072
      %2076 = vset.pattern.permute.xlu0 0
      %2077 = vperm.xlu0 %2076, %v1579
      %v2078 = vpop.permute.xlu0 %2077
      %2081 = vset.pattern.permute.xlu0 0
      %2082 = vperm.xlu0 %2081, %v1580
      %v2083 = vpop.permute.xlu0 %2082
      %2086 = vset.pattern.permute.xlu0 0
      %2087 = vperm.xlu0 %2086, %v1581
      %v2088 = vpop.permute.xlu0 %2087
      %2091 = vset.pattern.permute.xlu0 0
      %2092 = vperm.xlu0 %2091, %v1582
      %v2093 = vpop.permute.xlu0 %2092
      %2096 = vset.pattern.permute.xlu0 0
      %2097 = vperm.xlu0 %2096, %v1583
      %v2098 = vpop.permute.xlu0 %2097
      %2101 = vset.pattern.permute.xlu0 0
      %2102 = vperm.xlu0 %2101, %v1584
      %v2103 = vpop.permute.xlu0 %2102
      %2106 = vset.pattern.permute.xlu0 0
      %2107 = vperm.xlu0 %2106, %v1585
      %v2108 = vpop.permute.xlu0 %2107
      %2111 = vset.pattern.permute.xlu0 0
      %2112 = vperm.xlu0 %2111, %v1586
      %v2113 = vpop.permute.xlu0 %2112
      %2116 = vset.pattern.permute.xlu0 0
      %2117 = vperm.xlu0 %2116, %v1587
      %v2118 = vpop.permute.xlu0 %2117
      %2121 = vset.pattern.permute.xlu0 0
      %2122 = vperm.xlu0 %2121, %v1588
      %v2123 = vpop.permute.xlu0 %2122
      %2126 = vset.pattern.permute.xlu0 0
      %2127 = vperm.xlu0 %2126, %v1589
      %v2128 = vpop.permute.xlu0 %2127
      %2131 = vset.pattern.permute.xlu0 0
      %2132 = vperm.xlu0 %2131, %v1590
      %v2133 = vpop.permute.xlu0 %2132
      %v2135 = vadd.f32 %v1751, %v1978
      %v2136 = vadd.f32 %v1752, %v1978
      %v2137 = vadd.f32 %v1753, %v1978
      %v2138 = vadd.f32 %v1754, %v1978
      %v2139 = vadd.f32 %v1755, %v1978
      %v2140 = vadd.f32 %v1756, %v1978
      %v2141 = vadd.f32 %v1757, %v1978
      %v2142 = vadd.f32 %v1758, %v1983
      %v2143 = vadd.f32 %v1759, %v1983
      %v2144 = vadd.f32 %v1760, %v1983
      %v2145 = vadd.f32 %v1761, %v1983
      %v2146 = vadd.f32 %v1762, %v1983
      %v2147 = vadd.f32 %v1763, %v1983
      %v2148 = vadd.f32 %v1764, %v1983
      %v2149 = vadd.f32 %v1765, %v1988
      %v2150 = vadd.f32 %v1766, %v1988
      %v2151 = vadd.f32 %v1767, %v1988
      %v2152 = vadd.f32 %v1768, %v1988
      %v2153 = vadd.f32 %v1769, %v1988
      %v2154 = vadd.f32 %v1770, %v1988
      %v2155 = vadd.f32 %v1771, %v1988
      %v2156 = vadd.f32 %v1772, %v1993
      %v2157 = vadd.f32 %v1773, %v1993
      %v2158 = vadd.f32 %v1774, %v1993
      %v2159 = vadd.f32 %v1775, %v1993
      %v2160 = vadd.f32 %v1776, %v1993
      %v2161 = vadd.f32 %v1777, %v1993
      %v2162 = vadd.f32 %v1778, %v1993
      %v2163 = vadd.f32 %v1779, %v1998
      %v2164 = vadd.f32 %v1780, %v1998
      %v2165 = vadd.f32 %v1781, %v1998
      %v2166 = vadd.f32 %v1782, %v1998
      %v2167 = vadd.f32 %v1783, %v1998
      %v2168 = vadd.f32 %v1784, %v1998
      %v2169 = vadd.f32 %v1785, %v1998
      %v2170 = vadd.f32 %v1786, %v2003
      %v2171 = vadd.f32 %v1787, %v2003
      %v2172 = vadd.f32 %v1788, %v2003
      %v2173 = vadd.f32 %v1789, %v2003
      %v2174 = vadd.f32 %v1790, %v2003
      %v2175 = vadd.f32 %v1791, %v2003
      %v2176 = vadd.f32 %v1792, %v2003
      %v2177 = vadd.f32 %v1793, %v2008
      %v2178 = vadd.f32 %v1794, %v2008
      %v2179 = vadd.f32 %v1795, %v2008
      %v2180 = vadd.f32 %v1796, %v2008
      %v2181 = vadd.f32 %v1797, %v2008
      %v2182 = vadd.f32 %v1798, %v2008
      %v2183 = vadd.f32 %v1799, %v2008
      %v2184 = vadd.f32 %v1800, %v2013
      %v2185 = vadd.f32 %v1801, %v2013
      %v2186 = vadd.f32 %v1802, %v2013
      %v2187 = vadd.f32 %v1803, %v2013
      %v2188 = vadd.f32 %v1804, %v2013
      %v2189 = vadd.f32 %v1805, %v2013
      %v2190 = vadd.f32 %v1806, %v2013
      %v2191 = vadd.f32 %v1807, %v2018
      %v2192 = vadd.f32 %v1808, %v2018
      %v2193 = vadd.f32 %v1809, %v2018
      %v2194 = vadd.f32 %v1810, %v2018
      %v2195 = vadd.f32 %v1811, %v2018
      %v2196 = vadd.f32 %v1812, %v2018
      %v2197 = vadd.f32 %v1813, %v2018
      %v2198 = vadd.f32 %v1814, %v2023
      %v2199 = vadd.f32 %v1815, %v2023
      %v2200 = vadd.f32 %v1816, %v2023
      %v2201 = vadd.f32 %v1817, %v2023
      %v2202 = vadd.f32 %v1818, %v2023
      %v2203 = vadd.f32 %v1819, %v2023
      %v2204 = vadd.f32 %v1820, %v2023
      %v2205 = vadd.f32 %v1821, %v2028
      %v2206 = vadd.f32 %v1822, %v2028
      %v2207 = vadd.f32 %v1823, %v2028
      %v2208 = vadd.f32 %v1824, %v2028
      %v2209 = vadd.f32 %v1825, %v2028
      %v2210 = vadd.f32 %v1826, %v2028
      %v2211 = vadd.f32 %v1827, %v2028
      %v2212 = vadd.f32 %v1828, %v2033
      %v2213 = vadd.f32 %v1829, %v2033
      %v2214 = vadd.f32 %v1830, %v2033
      %v2215 = vadd.f32 %v1831, %v2033
      %v2216 = vadd.f32 %v1832, %v2033
      %v2217 = vadd.f32 %v1833, %v2033
      %v2218 = vadd.f32 %v1834, %v2033
      %v2219 = vadd.f32 %v1835, %v2038
      %v2220 = vadd.f32 %v1836, %v2038
      %v2221 = vadd.f32 %v1837, %v2038
      %v2222 = vadd.f32 %v1838, %v2038
      %v2223 = vadd.f32 %v1839, %v2038
      %v2224 = vadd.f32 %v1840, %v2038
      %v2225 = vadd.f32 %v1841, %v2038
      %v2226 = vadd.f32 %v1842, %v2043
      %v2227 = vadd.f32 %v1843, %v2043
      %v2228 = vadd.f32 %v1844, %v2043
      %v2229 = vadd.f32 %v1845, %v2043
      %v2230 = vadd.f32 %v1846, %v2043
      %v2231 = vadd.f32 %v1847, %v2043
      %v2232 = vadd.f32 %v1848, %v2043
      %v2233 = vadd.f32 %v1849, %v2048
      %v2234 = vadd.f32 %v1850, %v2048
      %v2235 = vadd.f32 %v1851, %v2048
      %v2236 = vadd.f32 %v1852, %v2048
      %v2237 = vadd.f32 %v1853, %v2048
      %v2238 = vadd.f32 %v1854, %v2048
      %v2239 = vadd.f32 %v1855, %v2048
      %v2240 = vadd.f32 %v1856, %v2053
      %v2241 = vadd.f32 %v1857, %v2053
      %v2242 = vadd.f32 %v1858, %v2053
      %v2243 = vadd.f32 %v1859, %v2053
      %v2244 = vadd.f32 %v1860, %v2053
      %v2245 = vadd.f32 %v1861, %v2053
      %v2246 = vadd.f32 %v1862, %v2053
      %v2247 = vadd.f32 %v1863, %v2058
      %v2248 = vadd.f32 %v1864, %v2058
      %v2249 = vadd.f32 %v1865, %v2058
      %v2250 = vadd.f32 %v1866, %v2058
      %v2251 = vadd.f32 %v1867, %v2058
      %v2252 = vadd.f32 %v1868, %v2058
      %v2253 = vadd.f32 %v1869, %v2058
      %v2254 = vadd.f32 %v1870, %v2063
      %v2255 = vadd.f32 %v1871, %v2063
      %v2256 = vadd.f32 %v1872, %v2063
      %v2257 = vadd.f32 %v1873, %v2063
      %v2258 = vadd.f32 %v1874, %v2063
      %v2259 = vadd.f32 %v1875, %v2063
      %v2260 = vadd.f32 %v1876, %v2063
      %v2261 = vadd.f32 %v1877, %v2068
      %v2262 = vadd.f32 %v1878, %v2068
      %v2263 = vadd.f32 %v1879, %v2068
      %v2264 = vadd.f32 %v1880, %v2068
      %v2265 = vadd.f32 %v1881, %v2068
      %v2266 = vadd.f32 %v1882, %v2068
      %v2267 = vadd.f32 %v1883, %v2068
      %v2268 = vadd.f32 %v1884, %v2073
      %v2269 = vadd.f32 %v1885, %v2073
      %v2270 = vadd.f32 %v1886, %v2073
      %v2271 = vadd.f32 %v1887, %v2073
      %v2272 = vadd.f32 %v1888, %v2073
      %v2273 = vadd.f32 %v1889, %v2073
      %v2274 = vadd.f32 %v1890, %v2073
      %v2275 = vadd.f32 %v1891, %v2078
      %v2276 = vadd.f32 %v1892, %v2078
      %v2277 = vadd.f32 %v1893, %v2078
      %v2278 = vadd.f32 %v1894, %v2078
      %v2279 = vadd.f32 %v1895, %v2078
      %v2280 = vadd.f32 %v1896, %v2078
      %v2281 = vadd.f32 %v1897, %v2078
      %v2282 = vadd.f32 %v1898, %v2083
      %v2283 = vadd.f32 %v1899, %v2083
      %v2284 = vadd.f32 %v1900, %v2083
      %v2285 = vadd.f32 %v1901, %v2083
      %v2286 = vadd.f32 %v1902, %v2083
      %v2287 = vadd.f32 %v1903, %v2083
      %v2288 = vadd.f32 %v1904, %v2083
      %v2289 = vadd.f32 %v1905, %v2088
      %v2290 = vadd.f32 %v1906, %v2088
      %v2291 = vadd.f32 %v1907, %v2088
      %v2292 = vadd.f32 %v1908, %v2088
      %v2293 = vadd.f32 %v1909, %v2088
      %v2294 = vadd.f32 %v1910, %v2088
      %v2295 = vadd.f32 %v1911, %v2088
      %v2296 = vadd.f32 %v1912, %v2093
      %v2297 = vadd.f32 %v1913, %v2093
      %v2298 = vadd.f32 %v1914, %v2093
      %v2299 = vadd.f32 %v1915, %v2093
      %v2300 = vadd.f32 %v1916, %v2093
      %v2301 = vadd.f32 %v1917, %v2093
      %v2302 = vadd.f32 %v1918, %v2093
      %v2303 = vadd.f32 %v1919, %v2098
      %v2304 = vadd.f32 %v1920, %v2098
      %v2305 = vadd.f32 %v1921, %v2098
      %v2306 = vadd.f32 %v1922, %v2098
      %v2307 = vadd.f32 %v1923, %v2098
      %v2308 = vadd.f32 %v1924, %v2098
      %v2309 = vadd.f32 %v1925, %v2098
      %v2310 = vadd.f32 %v1926, %v2103
      %v2311 = vadd.f32 %v1927, %v2103
      %v2312 = vadd.f32 %v1928, %v2103
      %v2313 = vadd.f32 %v1929, %v2103
      %v2314 = vadd.f32 %v1930, %v2103
      %v2315 = vadd.f32 %v1931, %v2103
      %v2316 = vadd.f32 %v1932, %v2103
      %v2317 = vadd.f32 %v1933, %v2108
      %v2318 = vadd.f32 %v1934, %v2108
      %v2319 = vadd.f32 %v1935, %v2108
      %v2320 = vadd.f32 %v1936, %v2108
      %v2321 = vadd.f32 %v1937, %v2108
      %v2322 = vadd.f32 %v1938, %v2108
      %v2323 = vadd.f32 %v1939, %v2108
      %v2324 = vadd.f32 %v1940, %v2113
      %v2325 = vadd.f32 %v1941, %v2113
      %v2326 = vadd.f32 %v1942, %v2113
      %v2327 = vadd.f32 %v1943, %v2113
      %v2328 = vadd.f32 %v1944, %v2113
      %v2329 = vadd.f32 %v1945, %v2113
      %v2330 = vadd.f32 %v1946, %v2113
      %v2331 = vadd.f32 %v1947, %v2118
      %v2332 = vadd.f32 %v1948, %v2118
      %v2333 = vadd.f32 %v1949, %v2118
      %v2334 = vadd.f32 %v1950, %v2118
      %v2335 = vadd.f32 %v1951, %v2118
      %v2336 = vadd.f32 %v1952, %v2118
      %v2337 = vadd.f32 %v1953, %v2118
      %v2338 = vadd.f32 %v1954, %v2123
      %v2339 = vadd.f32 %v1955, %v2123
      %v2340 = vadd.f32 %v1956, %v2123
      %v2341 = vadd.f32 %v1957, %v2123
      %v2342 = vadd.f32 %v1958, %v2123
      %v2343 = vadd.f32 %v1959, %v2123
      %v2344 = vadd.f32 %v1960, %v2123
      %v2345 = vadd.f32 %v1961, %v2128
      %v2346 = vadd.f32 %v1962, %v2128
      %v2347 = vadd.f32 %v1963, %v2128
      %v2348 = vadd.f32 %v1964, %v2128
      %v2349 = vadd.f32 %v1965, %v2128
      %v2350 = vadd.f32 %v1966, %v2128
      %v2351 = vadd.f32 %v1967, %v2128
      %v2352 = vadd.f32 %v1968, %v2133
      %v2353 = vadd.f32 %v1969, %v2133
      %v2354 = vadd.f32 %v1970, %v2133
      %v2355 = vadd.f32 %v1971, %v2133
      %v2356 = vadd.f32 %v1972, %v2133
      %v2357 = vadd.f32 %v1973, %v2133
      %v2358 = vadd.f32 %v1974, %v2133
      %2359 = vst [vmem:[%s177] sm:$0xff] %v2135
      %2360 = vst [vmem:[%s177 + $0x8] sm:$0xff] %v2136
      %2361 = vst [vmem:[%s177 + $0x10] sm:$0xff] %v2137
      %2362 = vst [vmem:[%s177 + $0x18] sm:$0xff] %v2138
      %2363 = vst [vmem:[%s177 + $0x20] sm:$0xff] %v2139
      %2364 = vst [vmem:[%s177 + $0x28] sm:$0xff] %v2140
      %2365 = vst.msk [vmem:[%s177 + $0x30] sm:$0xff] %vm409, %v2141
      %2366 = vst [vmem:[%s177 + $0x38] sm:$0xff] %v2142
      %2367 = vst [vmem:[%s177 + $0x40] sm:$0xff] %v2143
      %2368 = vst [vmem:[%s177 + $0x48] sm:$0xff] %v2144
      %2369 = vst [vmem:[%s177 + $0x50] sm:$0xff] %v2145
      %2370 = vst [vmem:[%s177 + $0x58] sm:$0xff] %v2146
      %2371 = vst [vmem:[%s177 + $0x60] sm:$0xff] %v2147
      %2372 = vst.msk [vmem:[%s177 + $0x68] sm:$0xff] %vm409, %v2148
      %2373 = vst [vmem:[%s177 + $0x70] sm:$0xff] %v2149
      %2374 = vst [vmem:[%s177 + $0x78] sm:$0xff] %v2150
      %2375 = vst [vmem:[%s177 + $0x80] sm:$0xff] %v2151
      %2376 = vst [vmem:[%s177 + $0x88] sm:$0xff] %v2152
      %2377 = vst [vmem:[%s177 + $0x90] sm:$0xff] %v2153
      %2378 = vst [vmem:[%s177 + $0x98] sm:$0xff] %v2154
      %2379 = vst.msk [vmem:[%s177 + $0xa0] sm:$0xff] %vm409, %v2155
      %2380 = vst [vmem:[%s177 + $0xa8] sm:$0xff] %v2156
      %2381 = vst [vmem:[%s177 + $0xb0] sm:$0xff] %v2157
      %2382 = vst [vmem:[%s177 + $0xb8] sm:$0xff] %v2158
      %2383 = vst [vmem:[%s177 + $0xc0] sm:$0xff] %v2159
      %2384 = vst [vmem:[%s177 + $0xc8] sm:$0xff] %v2160
      %2385 = vst [vmem:[%s177 + $0xd0] sm:$0xff] %v2161
      %2386 = vst.msk [vmem:[%s177 + $0xd8] sm:$0xff] %vm409, %v2162
      %2387 = vst [vmem:[%s177 + $0xe0] sm:$0xff] %v2163
      %2388 = vst [vmem:[%s177 + $0xe8] sm:$0xff] %v2164
      %2389 = vst [vmem:[%s177 + $0xf0] sm:$0xff] %v2165
      %2390 = vst [vmem:[%s177 + $0xf8] sm:$0xff] %v2166
      %2391 = vst [vmem:[%s177 + $0x100] sm:$0xff] %v2167
      %2392 = vst [vmem:[%s177 + $0x108] sm:$0xff] %v2168
      %2393 = vst.msk [vmem:[%s177 + $0x110] sm:$0xff] %vm409, %v2169
      %2394 = vst [vmem:[%s177 + $0x118] sm:$0xff] %v2170
      %2395 = vst [vmem:[%s177 + $0x120] sm:$0xff] %v2171
      %2396 = vst [vmem:[%s177 + $0x128] sm:$0xff] %v2172
      %2397 = vst [vmem:[%s177 + $0x130] sm:$0xff] %v2173
      %2398 = vst [vmem:[%s177 + $0x138] sm:$0xff] %v2174
      %2399 = vst [vmem:[%s177 + $0x140] sm:$0xff] %v2175
      %2400 = vst.msk [vmem:[%s177 + $0x148] sm:$0xff] %vm409, %v2176
      %2401 = vst [vmem:[%s177 + $0x150] sm:$0xff] %v2177
      %2402 = vst [vmem:[%s177 + $0x158] sm:$0xff] %v2178
      %2403 = vst [vmem:[%s177 + $0x160] sm:$0xff] %v2179
      %2404 = vst [vmem:[%s177 + $0x168] sm:$0xff] %v2180
      %2405 = vst [vmem:[%s177 + $0x170] sm:$0xff] %v2181
      %2406 = vst [vmem:[%s177 + $0x178] sm:$0xff] %v2182
      %2407 = vst.msk [vmem:[%s177 + $0x180] sm:$0xff] %vm409, %v2183
      %2408 = vst [vmem:[%s177 + $0x188] sm:$0xff] %v2184
      %2409 = vst [vmem:[%s177 + $0x190] sm:$0xff] %v2185
      %2410 = vst [vmem:[%s177 + $0x198] sm:$0xff] %v2186
      %2411 = vst [vmem:[%s177 + $0x1a0] sm:$0xff] %v2187
      %2412 = vst [vmem:[%s177 + $0x1a8] sm:$0xff] %v2188
      %2413 = vst [vmem:[%s177 + $0x1b0] sm:$0xff] %v2189
      %2414 = vst.msk [vmem:[%s177 + $0x1b8] sm:$0xff] %vm409, %v2190
      %2415 = vst [vmem:[%s177 + $0x1c0] sm:$0xff] %v2191
      %2416 = vst [vmem:[%s177 + $0x1c8] sm:$0xff] %v2192
      %2417 = vst [vmem:[%s177 + $0x1d0] sm:$0xff] %v2193
      %2418 = vst [vmem:[%s177 + $0x1d8] sm:$0xff] %v2194
      %2419 = vst [vmem:[%s177 + $0x1e0] sm:$0xff] %v2195
      %2420 = vst [vmem:[%s177 + $0x1e8] sm:$0xff] %v2196
      %2421 = vst.msk [vmem:[%s177 + $0x1f0] sm:$0xff] %vm409, %v2197
      %2422 = vst [vmem:[%s177 + $0x1f8] sm:$0xff] %v2198
      %2423 = vst [vmem:[%s177 + $0x200] sm:$0xff] %v2199
      %2424 = vst [vmem:[%s177 + $0x208] sm:$0xff] %v2200
      %2425 = vst [vmem:[%s177 + $0x210] sm:$0xff] %v2201
      %2426 = vst [vmem:[%s177 + $0x218] sm:$0xff] %v2202
      %2427 = vst [vmem:[%s177 + $0x220] sm:$0xff] %v2203
      %2428 = vst.msk [vmem:[%s177 + $0x228] sm:$0xff] %vm409, %v2204
      %2429 = vst [vmem:[%s177 + $0x230] sm:$0xff] %v2205
      %2430 = vst [vmem:[%s177 + $0x238] sm:$0xff] %v2206
      %2431 = vst [vmem:[%s177 + $0x240] sm:$0xff] %v2207
      %2432 = vst [vmem:[%s177 + $0x248] sm:$0xff] %v2208
      %2433 = vst [vmem:[%s177 + $0x250] sm:$0xff] %v2209
      %2434 = vst [vmem:[%s177 + $0x258] sm:$0xff] %v2210
      %2435 = vst.msk [vmem:[%s177 + $0x260] sm:$0xff] %vm409, %v2211
      %2436 = vst [vmem:[%s177 + $0x268] sm:$0xff] %v2212
      %2437 = vst [vmem:[%s177 + $0x270] sm:$0xff] %v2213
      %2438 = vst [vmem:[%s177 + $0x278] sm:$0xff] %v2214
      %2439 = vst [vmem:[%s177 + $0x280] sm:$0xff] %v2215
      %2440 = vst [vmem:[%s177 + $0x288] sm:$0xff] %v2216
      %2441 = vst [vmem:[%s177 + $0x290] sm:$0xff] %v2217
      %2442 = vst.msk [vmem:[%s177 + $0x298] sm:$0xff] %vm409, %v2218
      %2443 = vst [vmem:[%s177 + $0x2a0] sm:$0xff] %v2219
      %2444 = vst [vmem:[%s177 + $0x2a8] sm:$0xff] %v2220
      %2445 = vst [vmem:[%s177 + $0x2b0] sm:$0xff] %v2221
      %2446 = vst [vmem:[%s177 + $0x2b8] sm:$0xff] %v2222
      %2447 = vst [vmem:[%s177 + $0x2c0] sm:$0xff] %v2223
      %2448 = vst [vmem:[%s177 + $0x2c8] sm:$0xff] %v2224
      %2449 = vst.msk [vmem:[%s177 + $0x2d0] sm:$0xff] %vm409, %v2225
      %2450 = vst [vmem:[%s177 + $0x2d8] sm:$0xff] %v2226
      %2451 = vst [vmem:[%s177 + $0x2e0] sm:$0xff] %v2227
      %2452 = vst [vmem:[%s177 + $0x2e8] sm:$0xff] %v2228
      %2453 = vst [vmem:[%s177 + $0x2f0] sm:$0xff] %v2229
      %2454 = vst [vmem:[%s177 + $0x2f8] sm:$0xff] %v2230
      %2455 = vst [vmem:[%s177 + $0x300] sm:$0xff] %v2231
      %2456 = vst.msk [vmem:[%s177 + $0x308] sm:$0xff] %vm409, %v2232
      %2457 = vst [vmem:[%s177 + $0x310] sm:$0xff] %v2233
      %2458 = vst [vmem:[%s177 + $0x318] sm:$0xff] %v2234
      %2459 = vst [vmem:[%s177 + $0x320] sm:$0xff] %v2235
      %2460 = vst [vmem:[%s177 + $0x328] sm:$0xff] %v2236
      %2461 = vst [vmem:[%s177 + $0x330] sm:$0xff] %v2237
      %2462 = vst [vmem:[%s177 + $0x338] sm:$0xff] %v2238
      %2463 = vst.msk [vmem:[%s177 + $0x340] sm:$0xff] %vm409, %v2239
      %2464 = vst [vmem:[%s177 + $0x348] sm:$0xff] %v2240
      %2465 = vst [vmem:[%s177 + $0x350] sm:$0xff] %v2241
      %2466 = vst [vmem:[%s177 + $0x358] sm:$0xff] %v2242
      %2467 = vst [vmem:[%s177 + $0x360] sm:$0xff] %v2243
      %2468 = vst [vmem:[%s177 + $0x368] sm:$0xff] %v2244
      %2469 = vst [vmem:[%s177 + $0x370] sm:$0xff] %v2245
      %2470 = vst.msk [vmem:[%s177 + $0x378] sm:$0xff] %vm409, %v2246
      %2471 = vst [vmem:[%s177 + $0x380] sm:$0xff] %v2247
      %2472 = vst [vmem:[%s177 + $0x388] sm:$0xff] %v2248
      %2473 = vst [vmem:[%s177 + $0x390] sm:$0xff] %v2249
      %2474 = vst [vmem:[%s177 + $0x398] sm:$0xff] %v2250
      %2475 = vst [vmem:[%s177 + $0x3a0] sm:$0xff] %v2251
      %2476 = vst [vmem:[%s177 + $0x3a8] sm:$0xff] %v2252
      %2477 = vst.msk [vmem:[%s177 + $0x3b0] sm:$0xff] %vm409, %v2253
      %2478 = vst [vmem:[%s177 + $0x3b8] sm:$0xff] %v2254
      %2479 = vst [vmem:[%s177 + $0x3c0] sm:$0xff] %v2255
      %2480 = vst [vmem:[%s177 + $0x3c8] sm:$0xff] %v2256
      %2481 = vst [vmem:[%s177 + $0x3d0] sm:$0xff] %v2257
      %2482 = vst [vmem:[%s177 + $0x3d8] sm:$0xff] %v2258
      %2483 = vst [vmem:[%s177 + $0x3e0] sm:$0xff] %v2259
      %2484 = vst.msk [vmem:[%s177 + $0x3e8] sm:$0xff] %vm409, %v2260
      %2485 = vst [vmem:[%s177 + $0x3f0] sm:$0xff] %v2261
      %2486 = vst [vmem:[%s177 + $0x3f8] sm:$0xff] %v2262
      %2487 = vst [vmem:[%s177 + $0x400] sm:$0xff] %v2263
      %2488 = vst [vmem:[%s177 + $0x408] sm:$0xff] %v2264
      %2489 = vst [vmem:[%s177 + $0x410] sm:$0xff] %v2265
      %2490 = vst [vmem:[%s177 + $0x418] sm:$0xff] %v2266
      %2491 = vst.msk [vmem:[%s177 + $0x420] sm:$0xff] %vm409, %v2267
      %2492 = vst [vmem:[%s177 + $0x428] sm:$0xff] %v2268
      %2493 = vst [vmem:[%s177 + $0x430] sm:$0xff] %v2269
      %2494 = vst [vmem:[%s177 + $0x438] sm:$0xff] %v2270
      %2495 = vst [vmem:[%s177 + $0x440] sm:$0xff] %v2271
      %2496 = vst [vmem:[%s177 + $0x448] sm:$0xff] %v2272
      %2497 = vst [vmem:[%s177 + $0x450] sm:$0xff] %v2273
      %2498 = vst.msk [vmem:[%s177 + $0x458] sm:$0xff] %vm409, %v2274
      %2499 = vst [vmem:[%s177 + $0x460] sm:$0xff] %v2275
      %2500 = vst [vmem:[%s177 + $0x468] sm:$0xff] %v2276
      %2501 = vst [vmem:[%s177 + $0x470] sm:$0xff] %v2277
      %2502 = vst [vmem:[%s177 + $0x478] sm:$0xff] %v2278
      %2503 = vst [vmem:[%s177 + $0x480] sm:$0xff] %v2279
      %2504 = vst [vmem:[%s177 + $0x488] sm:$0xff] %v2280
      %2505 = vst.msk [vmem:[%s177 + $0x490] sm:$0xff] %vm409, %v2281
      %2506 = vst [vmem:[%s177 + $0x498] sm:$0xff] %v2282
      %2507 = vst [vmem:[%s177 + $0x4a0] sm:$0xff] %v2283
      %2508 = vst [vmem:[%s177 + $0x4a8] sm:$0xff] %v2284
      %2509 = vst [vmem:[%s177 + $0x4b0] sm:$0xff] %v2285
      %2510 = vst [vmem:[%s177 + $0x4b8] sm:$0xff] %v2286
      %2511 = vst [vmem:[%s177 + $0x4c0] sm:$0xff] %v2287
      %2512 = vst.msk [vmem:[%s177 + $0x4c8] sm:$0xff] %vm409, %v2288
      %2513 = vst [vmem:[%s177 + $0x4d0] sm:$0xff] %v2289
      %2514 = vst [vmem:[%s177 + $0x4d8] sm:$0xff] %v2290
      %2515 = vst [vmem:[%s177 + $0x4e0] sm:$0xff] %v2291
      %2516 = vst [vmem:[%s177 + $0x4e8] sm:$0xff] %v2292
      %2517 = vst [vmem:[%s177 + $0x4f0] sm:$0xff] %v2293
      %2518 = vst [vmem:[%s177 + $0x4f8] sm:$0xff] %v2294
      %2519 = vst.msk [vmem:[%s177 + $0x500] sm:$0xff] %vm409, %v2295
      %2520 = vst [vmem:[%s177 + $0x508] sm:$0xff] %v2296
      %2521 = vst [vmem:[%s177 + $0x510] sm:$0xff] %v2297
      %2522 = vst [vmem:[%s177 + $0x518] sm:$0xff] %v2298
      %2523 = vst [vmem:[%s177 + $0x520] sm:$0xff] %v2299
      %2524 = vst [vmem:[%s177 + $0x528] sm:$0xff] %v2300
      %2525 = vst [vmem:[%s177 + $0x530] sm:$0xff] %v2301
      %2526 = vst.msk [vmem:[%s177 + $0x538] sm:$0xff] %vm409, %v2302
      %2527 = vst [vmem:[%s177 + $0x540] sm:$0xff] %v2303
      %2528 = vst [vmem:[%s177 + $0x548] sm:$0xff] %v2304
      %2529 = vst [vmem:[%s177 + $0x550] sm:$0xff] %v2305
      %2530 = vst [vmem:[%s177 + $0x558] sm:$0xff] %v2306
      %2531 = vst [vmem:[%s177 + $0x560] sm:$0xff] %v2307
      %2532 = vst [vmem:[%s177 + $0x568] sm:$0xff] %v2308
      %2533 = vst.msk [vmem:[%s177 + $0x570] sm:$0xff] %vm409, %v2309
      %2534 = vst [vmem:[%s177 + $0x578] sm:$0xff] %v2310
      %2535 = vst [vmem:[%s177 + $0x580] sm:$0xff] %v2311
      %2536 = vst [vmem:[%s177 + $0x588] sm:$0xff] %v2312
      %2537 = vst [vmem:[%s177 + $0x590] sm:$0xff] %v2313
      %2538 = vst [vmem:[%s177 + $0x598] sm:$0xff] %v2314
      %2539 = vst [vmem:[%s177 + $0x5a0] sm:$0xff] %v2315
      %2540 = vst.msk [vmem:[%s177 + $0x5a8] sm:$0xff] %vm409, %v2316
      %2541 = vst [vmem:[%s177 + $0x5b0] sm:$0xff] %v2317
      %2542 = vst [vmem:[%s177 + $0x5b8] sm:$0xff] %v2318
      %2543 = vst [vmem:[%s177 + $0x5c0] sm:$0xff] %v2319
      %2544 = vst [vmem:[%s177 + $0x5c8] sm:$0xff] %v2320
      %2545 = vst [vmem:[%s177 + $0x5d0] sm:$0xff] %v2321
      %2546 = vst [vmem:[%s177 + $0x5d8] sm:$0xff] %v2322
      %2547 = vst.msk [vmem:[%s177 + $0x5e0] sm:$0xff] %vm409, %v2323
      %2548 = vst [vmem:[%s177 + $0x5e8] sm:$0xff] %v2324
      %2549 = vst [vmem:[%s177 + $0x5f0] sm:$0xff] %v2325
      %2550 = vst [vmem:[%s177 + $0x5f8] sm:$0xff] %v2326
      %2551 = vst [vmem:[%s177 + $0x600] sm:$0xff] %v2327
      %2552 = vst [vmem:[%s177 + $0x608] sm:$0xff] %v2328
      %2553 = vst [vmem:[%s177 + $0x610] sm:$0xff] %v2329
      %2554 = vst.msk [vmem:[%s177 + $0x618] sm:$0xff] %vm409, %v2330
      %2555 = vst [vmem:[%s177 + $0x620] sm:$0xff] %v2331
      %2556 = vst [vmem:[%s177 + $0x628] sm:$0xff] %v2332
      %2557 = vst [vmem:[%s177 + $0x630] sm:$0xff] %v2333
      %2558 = vst [vmem:[%s177 + $0x638] sm:$0xff] %v2334
      %2559 = vst [vmem:[%s177 + $0x640] sm:$0xff] %v2335
      %2560 = vst [vmem:[%s177 + $0x648] sm:$0xff] %v2336
      %2561 = vst.msk [vmem:[%s177 + $0x650] sm:$0xff] %vm409, %v2337
      %2562 = vst [vmem:[%s177 + $0x658] sm:$0xff] %v2338
      %2563 = vst [vmem:[%s177 + $0x660] sm:$0xff] %v2339
      %2564 = vst [vmem:[%s177 + $0x668] sm:$0xff] %v2340
      %2565 = vst [vmem:[%s177 + $0x670] sm:$0xff] %v2341
      %2566 = vst [vmem:[%s177 + $0x678] sm:$0xff] %v2342
      %2567 = vst [vmem:[%s177 + $0x680] sm:$0xff] %v2343
      %2568 = vst.msk [vmem:[%s177 + $0x688] sm:$0xff] %vm409, %v2344
      %2569 = vst [vmem:[%s177 + $0x690] sm:$0xff] %v2345
      %2570 = vst [vmem:[%s177 + $0x698] sm:$0xff] %v2346
      %2571 = vst [vmem:[%s177 + $0x6a0] sm:$0xff] %v2347
      %2572 = vst [vmem:[%s177 + $0x6a8] sm:$0xff] %v2348
      %2573 = vst [vmem:[%s177 + $0x6b0] sm:$0xff] %v2349
      %2574 = vst [vmem:[%s177 + $0x6b8] sm:$0xff] %v2350
      %2575 = vst.msk [vmem:[%s177 + $0x6c0] sm:$0xff] %vm409, %v2351
      %2576 = vst [vmem:[%s177 + $0x6c8] sm:$0xff] %v2352
      %2577 = vst [vmem:[%s177 + $0x6d0] sm:$0xff] %v2353
      %2578 = vst [vmem:[%s177 + $0x6d8] sm:$0xff] %v2354
      %2579 = vst [vmem:[%s177 + $0x6e0] sm:$0xff] %v2355
      %2580 = vst [vmem:[%s177 + $0x6e8] sm:$0xff] %v2356
      %2581 = vst [vmem:[%s177 + $0x6f0] sm:$0xff] %v2357
      %2582 = vst.msk [vmem:[%s177 + $0x6f8] sm:$0xff] %vm409, %v2358
      %s2583 = smul.u32 32, %s14
      %p2584 = scmp.lt.s32.totalorder %s2583, 63
      %s2585 = scalar_select %p2584, %s2583, 63
      %s2586 = smul.addr %s2585, 7
      %s2587 = smul.addr %s2586, 8
      %s2588 = scalar_lea.vmem %s3, %s2587
      // Predicated region
      $region33: #{tpu_custom_call.1} parent=31 // pred_check
        %p2589 = pneg %p100
      $region34: #{tpu_custom_call.1} parent=31 // pred_check_branch
        %2591 = sbr.rel (%p2589) target = $region36
      $region35: #{tpu_custom_call.1} parent=31 // pred_region
        %s2592 = smul.u32 32, %s14
      $region36: #{tpu_custom_call.1} parent=31 // pred_fallthru
        _
    $region32: #{tpu_custom_call.1} parent=5 // pred_fallthru
      _
    %p2593 = scmp.le.s32.totalorder 2, %s9
    // Predicated region
    $region37: #{tpu_custom_call.1} parent=5 // pred_check
      %p2594 = pneg %p2593
    $region38: #{tpu_custom_call.1} parent=5 // pred_check_branch
      %2596 = sbr.rel (%p2594) target = $region40
    $region39: #{tpu_custom_call.1} parent=5 // pred_region
      %s2597 = ssub.s32 %s9, 2
      // Predicated region
      $region41: #{tpu_custom_call.1} parent=39 // pred_check
        %p2598 = pneg %p106
      $region42: #{tpu_custom_call.1} parent=39 // pred_check_branch
        %2600 = sbr.rel (%p2598) target = $region44
      $region43: #{tpu_custom_call.1} parent=39 // pred_region
        %s2601 = smul.u32 32, %s15
        %p2602 = scmp.lt.s32.totalorder %s2601, 63
        %s2603 = scalar_select %p2602, %s2601, 63
        %s2604 = smul.addr %s2603, 7
        %s2605 = smul.addr %s2604, 8
        %s2606 = scalar_lea.vmem %s3, %s2605
      $region44: #{tpu_custom_call.1} parent=39 // pred_fallthru
        _
    $region40: #{tpu_custom_call.1} parent=5 // pred_fallthru
      _
  $region6: #{tpu_custom_call.1} parent=0 // loop_footer
    %s13 = sadd.s32 1, %s9
  $region7: #{tpu_custom_call.1} parent=0 // loop_footer_branch
    %8 = sbr.rel target = $region3
  $region8: #{tpu_custom_call.1} parent=0 // loop_exit
    _

</llo_original>
